<compile_context>
chip_gen: v7x
topology: tpu7x:2x2x1
jax: 0.10.0
libtpu: 0.0.40
codegen_flags: <defaults>
</compile_context>

<pallas_src>
import jax
import jax.numpy as jnp
from jax.experimental import pallas as pl
from jax.experimental.pallas import tpu as pltpu


def decoder_face_kernel(x_ref,     # (B, E)          bf16  embedded tokens for step t
                        h0_ref,    # (B, Hp)         f32   initial hidden (zero-padded)
                        wgx_ref,   # (E, 4*Hp)       bf16  x-side gate weights [r|z|n_x|n_h]
                        wgh_ref,   # (Hp, 4*Hp)      bf16  h-side gate weights [r|z|n_x|n_h]
                        bg_ref,    # (1, 4*Hp)       f32   fused gate biases
                        wout_ref,  # (Hp, TILE_O)    bf16  vocab tile ko of output projection
                        bout_ref,  # (1, TILE_O)     f32   bias tile (-1e30 on pad lanes)
                        logp_ref,  # (KO, B, TILE_O) f32   OUT: per-step log-probs (tiled)
                        hnew_ref,  # (B, Hp)         f32   OUT: final hidden state
                        h_state,   # (B, Hp)         f32   scratch: hidden carried across t
                        m_sc,      # (B, 1)          f32   scratch: running max over tiles
                        l_sc):     # (B, 1)          f32   scratch: running sum-exp
    t = pl.program_id(0)
    ko = pl.program_id(1)
    n_ko = pl.num_programs(1)
    Hp = h_state.shape[-1]

    @pl.when(jnp.logical_and(t == 0, ko == 0))
    def _():                                   # load the initial hidden state once
        h_state[...] = h0_ref[...]

    @pl.when(ko == 0)
    def _():                                   # one GRU step per t (first vocab tile only)
        x = jnp.maximum(x_ref[...], 0.0)                       # relu(embedding), bf16
        h = h_state[...]                                       # (B, Hp) f32
        gates = (jnp.dot(x, wgx_ref[...], preferred_element_type=jnp.float32)
                 + jnp.dot(h.astype(jnp.bfloat16), wgh_ref[...],
                           preferred_element_type=jnp.float32)
                 + bg_ref[...])                                # (B, 4*Hp) f32
        r = jax.nn.sigmoid(gates[:, 0 * Hp:1 * Hp])            # 128-lane-aligned static slices
        z = jax.nn.sigmoid(gates[:, 1 * Hp:2 * Hp])
        n = jnp.tanh(gates[:, 2 * Hp:3 * Hp] + r * gates[:, 3 * Hp:4 * Hp])
        h_new = (1.0 - z) * n + z * h                          # padded lanes stay exactly 0
        h_state[...] = h_new
        hnew_ref[...] = h_new
        m_sc[...] = jnp.full(m_sc.shape, -jnp.inf, m_sc.dtype)
        l_sc[...] = jnp.zeros(l_sc.shape, l_sc.dtype)

    # ---- output projection, vocab tile `ko`, with online log-softmax stats ----
    hb = h_state[...].astype(jnp.bfloat16)
    logits = jnp.dot(hb, wout_ref[...],
                     preferred_element_type=jnp.float32) + bout_ref[...]   # (B, TILE_O)
    m_prev = m_sc[...]
    m_new = jnp.maximum(m_prev, jnp.max(logits, axis=-1, keepdims=True))
    l_sc[...] = (l_sc[...] * jnp.exp(m_prev - m_new)
                 + jnp.sum(jnp.exp(logits - m_new), axis=-1, keepdims=True))
    m_sc[...] = m_new
    logp_ref[ko] = logits                      # raw logits tile, lane-dense store

    @pl.when(ko == n_ko - 1)
    def _():                                   # finalize log-softmax for step t
        lse = m_sc[...] + jnp.log(l_sc[...])                   # (B, 1)
        logp_ref[...] = logp_ref[...] - lse


def _round_up(x, m):
    return ((x + m - 1) // m) * m


def pack_params(params, tile_o=512):
    """Pack per-gate f32 params into the fused, lane-padded bf16 kernel layout."""
    E = params["w_ih"].shape[1]
    H = params["w_ih"].shape[2]
    O = params["w_out"].shape[1]
    Hp = _round_up(max(H, 128), 128)
    opad_min = _round_up(O, 128)
    if opad_min <= tile_o:
        tile_o = opad_min
    Opad = _round_up(O, tile_o)

    # gate weights, column blocks [r | z | n_x | n_h], each padded to Hp lanes
    wgx = jnp.zeros((E, 4 * Hp), jnp.float32)
    wgh = jnp.zeros((Hp, 4 * Hp), jnp.float32)
    bg = jnp.zeros((1, 4 * Hp), jnp.float32)
    wgx = wgx.at[:, 0 * Hp:0 * Hp + H].set(params["w_ih"][0])
    wgx = wgx.at[:, 1 * Hp:1 * Hp + H].set(params["w_ih"][1])
    wgx = wgx.at[:, 2 * Hp:2 * Hp + H].set(params["w_ih"][2])   # n: x side only
    wgh = wgh.at[:H, 0 * Hp:0 * Hp + H].set(params["w_hh"][0])
    wgh = wgh.at[:H, 1 * Hp:1 * Hp + H].set(params["w_hh"][1])
    wgh = wgh.at[:H, 3 * Hp:3 * Hp + H].set(params["w_hh"][2])  # n: h side only
    bg = bg.at[:, 0 * Hp:0 * Hp + H].set(params["b_ih"][0] + params["b_hh"][0])
    bg = bg.at[:, 1 * Hp:1 * Hp + H].set(params["b_ih"][1] + params["b_hh"][1])
    bg = bg.at[:, 2 * Hp:2 * Hp + H].set(params["b_ih"][2])
    bg = bg.at[:, 3 * Hp:3 * Hp + H].set(params["b_hh"][2])     # b_hn stays inside r*(.)

    wout = jnp.zeros((Hp, Opad), jnp.float32).at[:H, :O].set(params["w_out"])
    bout = jnp.full((1, Opad), -1e30, jnp.float32).at[:, :O].set(params["b_out"])

    return {
        "embedding": params["embedding"].astype(jnp.bfloat16),
        "w_gx": wgx.astype(jnp.bfloat16),
        "w_gh": wgh.astype(jnp.bfloat16),
        "b_g": bg,
        "w_out": wout.astype(jnp.bfloat16),
        "b_out": bout,
        "dims": (E, H, O, Hp, Opad, tile_o),
    }


def decoder_face_decode(tokens, hidden0, packed):
    """Run T sequential DecoderFace.forward steps for B independent streams.

    tokens:  (T, B) int32 token ids,  hidden0: (B, H) f32.
    Returns (log-probs (T, B, O), final hidden (B, H)); entry (t, b) equals the
    t-th sequential call of the PyTorch module on stream b.
    """
    E, H, O, Hp, Opad, TILE_O = packed["dims"]
    KO = Opad // TILE_O
    T, B = tokens.shape

    # whole-sequence embedding gather: a single XLA op, amortized over all steps
    x = packed["embedding"][tokens]                               # (T, B, E) bf16
    h0 = jnp.zeros((B, Hp), jnp.float32).at[:, :H].set(hidden0.astype(jnp.float32))

    # TODO(synk): pipeline_mode=pl.Buffered(1) on the grid-invariant weight specs
    #             (halves their VMEM at production sizes); mark a batch/vocab axis
    #             "parallel" for v7x megacore once the carried state is split per core.
    grid_spec = pltpu.PrefetchScalarGridSpec(
        num_scalar_prefetch=0,
        grid=(T, KO),                       # t outer (sequential carry), vocab tile inner
        in_specs=[
            pl.BlockSpec((None, B, E), lambda t, ko: (t, 0, 0)),
            pl.BlockSpec((B, Hp), lambda t, ko: (0, 0)),
            # constant index maps -> gate weights DMA'd once, resident for all T steps
            pl.BlockSpec((E, 4 * Hp), lambda t, ko: (0, 0)),
            pl.BlockSpec((Hp, 4 * Hp), lambda t, ko: (0, 0)),
            pl.BlockSpec((1, 4 * Hp), lambda t, ko: (0, 0)),
            # vocab projection streamed tile-by-tile (pipelines behind the matmul)
            pl.BlockSpec((Hp, TILE_O), lambda t, ko: (0, ko)),
            pl.BlockSpec((1, TILE_O), lambda t, ko: (0, ko)),
        ],
        out_specs=(
            pl.BlockSpec((None, KO, B, TILE_O), lambda t, ko: (t, 0, 0, 0)),
            pl.BlockSpec((B, Hp), lambda t, ko: (0, 0)),
        ),
        scratch_shapes=[
            pltpu.VMEM((B, Hp), jnp.float32),   # hidden state carried across steps
            pltpu.VMEM((B, 1), jnp.float32),    # running max (online log-softmax)
            pltpu.VMEM((B, 1), jnp.float32),    # running sum-exp
        ],
    )

    w_bytes = 2 * (E * 4 * Hp + Hp * 4 * Hp) + 4 * 4 * Hp
    vocab_bytes = (2 * Hp * Opad + 4 * Opad) * (T if KO > 1 else 1)
    io_bytes = 2 * T * B * E + 4 * B * Hp + 4 * T * KO * B * TILE_O + 4 * B * Hp
    cost = pl.CostEstimate(
        flops=2 * T * B * ((E + Hp) * 4 * Hp + Hp * Opad),
        transcendentals=T * B * (3 * Hp + Opad),
        bytes_accessed=w_bytes + vocab_bytes + io_bytes,
    )

    logp4, h_new = pl.pallas_call(
        decoder_face_kernel,
        grid_spec=grid_spec,
        out_shape=(jax.ShapeDtypeStruct((T, KO, B, TILE_O), jnp.float32),
                   jax.ShapeDtypeStruct((B, Hp), jnp.float32)),
        compiler_params=pltpu.CompilerParams(
            # both axes carry state (hidden across t, softmax stats across ko)
            dimension_semantics=("arbitrary", "arbitrary")),
        cost_estimate=cost,
    )(x, h0, packed["w_gx"], packed["w_gh"], packed["b_g"],
      packed["w_out"], packed["b_out"])

    # (T, KO, B, TILE_O) -> (T, B, Opad) -> slice off lane padding
    logp = jnp.moveaxis(logp4, 2, 1).reshape(T, B, Opad)[:, :, :O]
    return logp, h_new[:, :H]


def decoder_face_forward(token, hidden, packed):
    """Exact single-step module API: token scalar, hidden (1, 1, H).
    Returns (log-probs (1, O), hidden (1, 1, H))."""
    H = packed["dims"][1]
    tokens = jnp.asarray(token, jnp.int32).reshape(1, 1)
    logp, h_new = decoder_face_decode(tokens, hidden.reshape(1, H), packed)
    return logp[0], h_new.reshape(1, 1, H)


# --------------------------- parameters & references ---------------------------

def init_params(key, hidden_size, embedding_size, output_size):
    ks = jax.random.split(key, 8)
    scale = 1.0 / jnp.sqrt(hidden_size)
    return {
        "embedding": jax.random.normal(ks[0], (output_size, embedding_size), jnp.float32),
        # gate order [r, z, n]; stored already transposed for x @ W
        "w_ih": jax.random.uniform(ks[1], (3, embedding_size, hidden_size),
                                   jnp.float32, -scale, scale),
        "w_hh": jax.random.uniform(ks[2], (3, hidden_size, hidden_size),
                                   jnp.float32, -scale, scale),
        "b_ih": jax.random.uniform(ks[3], (3, 1, hidden_size), jnp.float32, -scale, scale),
        "b_hh": jax.random.uniform(ks[4], (3, 1, hidden_size), jnp.float32, -scale, scale),
        "w_out": jax.random.uniform(ks[5], (hidden_size, output_size),
                                    jnp.float32, -scale, scale),
        "b_out": jax.random.uniform(ks[6], (1, output_size), jnp.float32, -scale, scale),
    }


def reference_forward(token, hidden, params):
    """Pure-JAX f32 reference for one module forward call (batch 1)."""
    x = jnp.maximum(params["embedding"][token].reshape(1, -1), 0.0)
    h = hidden.reshape(1, -1)
    gi = [x @ params["w_ih"][k] + params["b_ih"][k] for k in range(3)]
    gh = [h @ params["w_hh"][k] + params["b_hh"][k] for k in range(3)]
    r = jax.nn.sigmoid(gi[0] + gh[0])
    z = jax.nn.sigmoid(gi[1] + gh[1])
    n = jnp.tanh(gi[2] + r * gh[2])
    h_new = (1.0 - z) * n + z * h
    logits = h_new @ params["w_out"] + params["b_out"]
    return jax.nn.log_softmax(logits, axis=1), h_new.reshape(1, 1, -1)


def reference_decode(tokens, hidden0, params):
    """T sequential module forwards (f32), batched over independent streams."""
    T, _ = tokens.shape
    h = hidden0
    outs = []
    for t in range(T):
        x = jnp.maximum(params["embedding"][tokens[t]], 0.0)
        gi = [x @ params["w_ih"][k] + params["b_ih"][k] for k in range(3)]
        gh = [h @ params["w_hh"][k] + params["b_hh"][k] for k in range(3)]
        r = jax.nn.sigmoid(gi[0] + gh[0])
        z = jax.nn.sigmoid(gi[1] + gh[1])
        n = jnp.tanh(gi[2] + r * gh[2])
        h = (1.0 - z) * n + z * h
        logits = h @ params["w_out"] + params["b_out"]
        outs.append(jax.nn.log_softmax(logits, axis=-1))
    return jnp.stack(outs, 0), h


def packed_reference_decode(tokens, hidden0, packed):
    """Pure-JAX re-implementation of the exact packed / bf16 math the kernel does."""
    E, H, O, Hp, Opad, TILE_O = packed["dims"]
    T, B = tokens.shape
    h = jnp.zeros((B, Hp), jnp.float32).at[:, :H].set(hidden0)
    outs = []
    for t in range(T):
        x = jnp.maximum(packed["embedding"][tokens[t]], 0.0)
        gates = (jnp.dot(x, packed["w_gx"], preferred_element_type=jnp.float32)
                 + jnp.dot(h.astype(jnp.bfloat16), packed["w_gh"],
                           preferred_element_type=jnp.float32)
                 + packed["b_g"])
        r = jax.nn.sigmoid(gates[:, 0 * Hp:1 * Hp])
        z = jax.nn.sigmoid(gates[:, 1 * Hp:2 * Hp])
        n = jnp.tanh(gates[:, 2 * Hp:3 * Hp] + r * gates[:, 3 * Hp:4 * Hp])
        h = (1.0 - z) * n + z * h
        logits = jnp.dot(h.astype(jnp.bfloat16), packed["w_out"],
                         preferred_element_type=jnp.float32) + packed["b_out"]
        outs.append(jax.nn.log_softmax(logits, axis=-1)[:, :O])
    return jnp.stack(outs, 0), h[:, :H]


if __name__ == "__main__":
    hidden_size, embedding_size, output_size = 32, 32, 200
    T, B = 6, 8                                   # decode steps x independent streams

    key = jax.random.PRNGKey(0)
    kp, kh, kt = jax.random.split(key, 3)
    params = init_params(kp, hidden_size, embedding_size, output_size)
    # tile_o=128 -> Opad=256, KO=2 vocab tiles: exercises the online log-softmax path
    packed = pack_params(params, tile_o=128)

    tokens = jax.random.randint(kt, (T, B), 0, output_size, dtype=jnp.int32)
    hidden0 = jax.random.normal(kh, (B, hidden_size), jnp.float32)

    decode = jax.jit(lambda tk, h: decoder_face_decode(tk, h, packed))
    logp, h_final = decode(tokens, hidden0)
    jax.block_until_ready((logp, h_final))
    assert logp.shape == (T, B, output_size) and h_final.shape == (B, hidden_size)

    # 1) exactness vs. a pure-JAX re-implementation of the same packed bf16 math
    pk_logp, pk_h = packed_reference_decode(tokens, hidden0, packed)
    assert jnp.allclose(logp, pk_logp, atol=5e-3, rtol=0.0), \
        float(jnp.max(jnp.abs(logp - pk_logp)))
    assert jnp.allclose(h_final, pk_h, atol=5e-3, rtol=0.0), \
        float(jnp.max(jnp.abs(h_final - pk_h)))

    # 2) semantics vs. the f32 module reference (bf16 weights => relaxed tolerance;
    #    rounding compounds over T recurrent steps)
    ref_logp, ref_h = reference_decode(tokens, hidden0, params)
    assert jnp.allclose(logp, ref_logp, atol=7.5e-2, rtol=0.0), \
        float(jnp.max(jnp.abs(logp - ref_logp)))
    assert jnp.allclose(h_final, ref_h, atol=7.5e-2, rtol=0.0), \
        float(jnp.max(jnp.abs(h_final - ref_h)))

    # 3) module-exact single-step API (batch 1, one token) still matches
    lp1, h1 = decoder_face_forward(tokens[0, 0], hidden0[0].reshape(1, 1, -1), packed)
    lp1_ref, h1_ref = reference_forward(tokens[0, 0], hidden0[0].reshape(1, 1, -1), params)
    assert lp1.shape == (1, output_size) and h1.shape == (1, 1, hidden_size)
    assert jnp.allclose(lp1, lp1_ref, atol=5e-2, rtol=0.0)
    assert jnp.allclose(h1, h1_ref, atol=5e-2, rtol=0.0)

    print("KERNEL_OK")
</pallas_src>

<mosaic_0001>
module attributes {stable_mosaic.version = 11 : i64} {
  func.func @decoder_face_kernel(%arg0: i32, %arg1: i32, %arg2: memref<1x8x32xbf16, #tpu.memory_space<vmem>>, %arg3: memref<8x128xf32, #tpu.memory_space<vmem>>, %arg4: memref<32x512xbf16, #tpu.memory_space<vmem>>, %arg5: memref<128x512xbf16, #tpu.memory_space<vmem>>, %arg6: memref<1x512xf32, #tpu.memory_space<vmem>>, %arg7: memref<128x128xbf16, #tpu.memory_space<vmem>>, %arg8: memref<1x128xf32, #tpu.memory_space<vmem>>, %arg9: memref<1x2x8x128xf32, #tpu.memory_space<vmem>>, %arg10: memref<8x128xf32, #tpu.memory_space<vmem>>, %arg11: memref<8x128xf32, #tpu.memory_space<vmem>>, %arg12: memref<8x1xf32, #tpu.memory_space<vmem>>, %arg13: memref<8x1xf32, #tpu.memory_space<vmem>>) attributes {dimension_semantics = [#tpu.dimension_semantics<arbitrary>, #tpu.dimension_semantics<arbitrary>], iteration_bounds = array<i64: 6, 2>, scalar_prefetch = 0 : i64, scratch_operands = 3 : i64, tpu.core_type = #tpu.core_type<tc>, window_params = [{transform_indices = @transform_0, window_bounds = array<i64: 1, 8, 32>}, {pipeline_mode = #tpu.pipeline_mode<synchronous>, transform_indices = @transform_1, window_bounds = array<i64: 8, 128>}, {pipeline_mode = #tpu.pipeline_mode<synchronous>, transform_indices = @transform_2, window_bounds = array<i64: 32, 512>}, {pipeline_mode = #tpu.pipeline_mode<synchronous>, transform_indices = @transform_3, window_bounds = array<i64: 128, 512>}, {pipeline_mode = #tpu.pipeline_mode<synchronous>, transform_indices = @transform_4, window_bounds = array<i64: 1, 512>}, {transform_indices = @transform_5, window_bounds = array<i64: 128, 128>}, {transform_indices = @transform_6, window_bounds = array<i64: 1, 128>}, {transform_indices = @transform_7, window_bounds = array<i64: 1, 2, 8, 128>}, {pipeline_mode = #tpu.pipeline_mode<synchronous>, transform_indices = @transform_8, window_bounds = array<i64: 8, 128>}]} {
    %c0_i32 = arith.constant 0 : i32
    %0 = arith.cmpi eq, %arg0, %c0_i32 : i32
    %c0_i32_0 = arith.constant 0 : i32
    %1 = arith.cmpi eq, %arg1, %c0_i32_0 : i32
    %2 = arith.andi %0, %1 : i1
    %3 = arith.extui %2 : i1 to i32
    %c0_i32_1 = arith.constant 0 : i32
    %4 = arith.cmpi ne, %3, %c0_i32_1 : i32
    scf.if %4 {
      %c0_23 = arith.constant 0 : index
      %c0_24 = arith.constant 0 : index
      %38 = vector.load %arg3[%c0_23, %c0_24] : memref<8x128xf32, #tpu.memory_space<vmem>>, vector<8x128xf32>
      %c0_25 = arith.constant 0 : index
      %c0_26 = arith.constant 0 : index
      %39 = vector.load %arg11[%c0_25, %c0_26] : memref<8x128xf32, #tpu.memory_space<vmem>>, vector<8x128xf32>
      tpu.vector_store %arg11[%c0_25, %c0_26], %38 {strides = array<i32>} : memref<8x128xf32, #tpu.memory_space<vmem>>, vector<8x128xf32>,
    } else {
    }
    %c0_i32_2 = arith.constant 0 : i32
    %5 = arith.cmpi eq, %arg1, %c0_i32_2 : i32
    %6 = arith.extui %5 : i1 to i32
    %c0_i32_3 = arith.constant 0 : i32
    %7 = arith.cmpi ne, %6, %c0_i32_3 : i32
    scf.if %7 {
      %c0_23 = arith.constant 0 : index
      %c0_24 = arith.constant 0 : index
      %c0_25 = arith.constant 0 : index
      %38 = vector.load %arg2[%c0_23, %c0_24, %c0_25] : memref<1x8x32xbf16, #tpu.memory_space<vmem>>, vector<1x8x32xbf16>
      %39 = vector.shape_cast %38 : vector<1x8x32xbf16> to vector<8x32xbf16>
      %cst_26 = arith.constant 0.000000e+00 : bf16
      %40 = vector.broadcast %cst_26 : bf16 to vector<8x32xbf16>
      %41 = arith.maximumf %39, %40 : vector<8x32xbf16>
      %c0_27 = arith.constant 0 : index
      %c0_28 = arith.constant 0 : index
      %42 = vector.load %arg11[%c0_27, %c0_28] : memref<8x128xf32, #tpu.memory_space<vmem>>, vector<8x128xf32>
      %c0_29 = arith.constant 0 : index
      %c0_30 = arith.constant 0 : index
      %43 = vector.load %arg4[%c0_29, %c0_30] : memref<32x512xbf16, #tpu.memory_space<vmem>>, vector<32x512xbf16>
      %cst_31 = arith.constant dense<0.000000e+00> : vector<8x512xf32>
      %44 = tpu.matmul %41, %43, %cst_31 {dimension_numbers = #tpu.dot_dimension_numbers<[1], [0], [0], [1], [0, 0, 1, 1], [], []>} : vector<8x32xbf16>, vector<32x512xbf16>, vector<8x512xf32> -> vector<8x512xf32>
      %45 = arith.truncf %42 : vector<8x128xf32> to vector<8x128xbf16>
      %c0_32 = arith.constant 0 : index
      %c0_33 = arith.constant 0 : index
      %46 = vector.load %arg5[%c0_32, %c0_33] : memref<128x512xbf16, #tpu.memory_space<vmem>>, vector<128x512xbf16>
      %cst_34 = arith.constant dense<0.000000e+00> : vector<8x512xf32>
      %47 = tpu.matmul %45, %46, %cst_34 {dimension_numbers = #tpu.dot_dimension_numbers<[1], [0], [0], [1], [0, 0, 1, 1], [], []>} : vector<8x128xbf16>, vector<128x512xbf16>, vector<8x512xf32> -> vector<8x512xf32>
      %48 = arith.addf %44, %47 : vector<8x512xf32>
      %c0_35 = arith.constant 0 : index
      %c0_36 = arith.constant 0 : index
      %49 = vector.load %arg6[%c0_35, %c0_36] : memref<1x512xf32, #tpu.memory_space<vmem>>, vector<1x512xf32>
      %50 = vector.broadcast %49 : vector<1x512xf32> to vector<8x512xf32>
      %51 = arith.addf %48, %50 : vector<8x512xf32>
      %52 = vector.extract_strided_slice %51 {offsets = [0, 0], sizes = [8, 128], strides = [1, 1]} : vector<8x512xf32> to vector<8x128xf32>
      %53 = arith.negf %52 : vector<8x128xf32>
      %54 = math.exp %53 : vector<8x128xf32>
      %cst_37 = arith.constant 1.000000e+00 : f32
      %55 = vector.broadcast %cst_37 : f32 to vector<8x128xf32>
      %56 = arith.addf %55, %54 : vector<8x128xf32>
      %57 = arith.divf %55, %56 : vector<8x128xf32>
      %58 = vector.extract_strided_slice %51 {offsets = [0, 128], sizes = [8, 128], strides = [1, 1]} : vector<8x512xf32> to vector<8x128xf32>
      %59 = arith.negf %58 : vector<8x128xf32>
      %60 = math.exp %59 : vector<8x128xf32>
      %cst_38 = arith.constant 1.000000e+00 : f32
      %61 = vector.broadcast %cst_38 : f32 to vector<8x128xf32>
      %62 = arith.addf %61, %60 : vector<8x128xf32>
      %63 = arith.divf %61, %62 : vector<8x128xf32>
      %64 = vector.extract_strided_slice %51 {offsets = [0, 256], sizes = [8, 128], strides = [1, 1]} : vector<8x512xf32> to vector<8x128xf32>
      %65 = vector.extract_strided_slice %51 {offsets = [0, 384], sizes = [8, 128], strides = [1, 1]} : vector<8x512xf32> to vector<8x128xf32>
      %66 = arith.mulf %57, %65 : vector<8x128xf32>
      %67 = arith.addf %64, %66 : vector<8x128xf32>
      %68 = math.tanh %67 : vector<8x128xf32>
      %cst_39 = arith.constant 1.000000e+00 : f32
      %69 = vector.broadcast %cst_39 : f32 to vector<8x128xf32>
      %70 = arith.subf %69, %63 : vector<8x128xf32>
      %71 = arith.mulf %70, %68 : vector<8x128xf32>
      %72 = arith.mulf %63, %42 : vector<8x128xf32>
      %73 = arith.addf %71, %72 : vector<8x128xf32>
      %c0_40 = arith.constant 0 : index
      %c0_41 = arith.constant 0 : index
      %74 = vector.load %arg11[%c0_40, %c0_41] : memref<8x128xf32, #tpu.memory_space<vmem>>, vector<8x128xf32>
      tpu.vector_store %arg11[%c0_40, %c0_41], %73 {strides = array<i32>} : memref<8x128xf32, #tpu.memory_space<vmem>>, vector<8x128xf32>,
      %c0_42 = arith.constant 0 : index
      %c0_43 = arith.constant 0 : index
      %75 = vector.load %arg10[%c0_42, %c0_43] : memref<8x128xf32, #tpu.memory_space<vmem>>, vector<8x128xf32>
      tpu.vector_store %arg10[%c0_42, %c0_43], %73 {strides = array<i32>} : memref<8x128xf32, #tpu.memory_space<vmem>>, vector<8x128xf32>,
      %cst_44 = arith.constant 0xFF800000 : f32
      %76 = vector.broadcast %cst_44 : f32 to vector<8x1xf32>
      %c0_45 = arith.constant 0 : index
      %c0_46 = arith.constant 0 : index
      %77 = vector.load %arg12[%c0_45, %c0_46] : memref<8x1xf32, #tpu.memory_space<vmem>>, vector<8x1xf32>
      tpu.vector_store %arg12[%c0_45, %c0_46], %76 {strides = array<i32>} : memref<8x1xf32, #tpu.memory_space<vmem>>, vector<8x1xf32>,
      %cst_47 = arith.constant 0.000000e+00 : f32
      %78 = vector.broadcast %cst_47 : f32 to vector<8x1xf32>
      %c0_48 = arith.constant 0 : index
      %c0_49 = arith.constant 0 : index
      %79 = vector.load %arg13[%c0_48, %c0_49] : memref<8x1xf32, #tpu.memory_space<vmem>>, vector<8x1xf32>
      tpu.vector_store %arg13[%c0_48, %c0_49], %78 {strides = array<i32>} : memref<8x1xf32, #tpu.memory_space<vmem>>, vector<8x1xf32>,
    } else {
    }
    %c0 = arith.constant 0 : index
    %c0_4 = arith.constant 0 : index
    %8 = vector.load %arg11[%c0, %c0_4] : memref<8x128xf32, #tpu.memory_space<vmem>>, vector<8x128xf32>
    %9 = arith.truncf %8 : vector<8x128xf32> to vector<8x128xbf16>
    %c0_5 = arith.constant 0 : index
    %c0_6 = arith.constant 0 : index
    %10 = vector.load %arg7[%c0_5, %c0_6] : memref<128x128xbf16, #tpu.memory_space<vmem>>, vector<128x128xbf16>
    %cst = arith.constant dense<0.000000e+00> : vector<8x128xf32>
    %11 = tpu.matmul %9, %10, %cst {dimension_numbers = #tpu.dot_dimension_numbers<[1], [0], [0], [1], [0, 0, 1, 1], [], []>} : vector<8x128xbf16>, vector<128x128xbf16>, vector<8x128xf32> -> vector<8x128xf32>
    %c0_7 = arith.constant 0 : index
    %c0_8 = arith.constant 0 : index
    %12 = vector.load %arg8[%c0_7, %c0_8] : memref<1x128xf32, #tpu.memory_space<vmem>>, vector<1x128xf32>
    %13 = vector.broadcast %12 : vector<1x128xf32> to vector<8x128xf32>
    %14 = arith.addf %11, %13 : vector<8x128xf32>
    %c0_9 = arith.constant 0 : index
    %c0_10 = arith.constant 0 : index
    %15 = vector.load %arg12[%c0_9, %c0_10] : memref<8x1xf32, #tpu.memory_space<vmem>>, vector<8x1xf32>
    %cst_11 = arith.constant dense<0xFF800000> : vector<8xf32>
    %16 = vector.multi_reduction <maximumf>, %14, %cst_11 [1] : vector<8x128xf32> to vector<8xf32>
    %17 = vector.shape_cast %16 : vector<8xf32> to vector<8x1xf32>
    %18 = arith.maximumf %15, %17 : vector<8x1xf32>
    %c0_12 = arith.constant 0 : index
    %c0_13 = arith.constant 0 : index
    %19 = vector.load %arg13[%c0_12, %c0_13] : memref<8x1xf32, #tpu.memory_space<vmem>>, vector<8x1xf32>
    %20 = arith.subf %15, %18 : vector<8x1xf32>
    %21 = math.exp %20 : vector<8x1xf32>
    %22 = arith.mulf %19, %21 : vector<8x1xf32>
    %23 = vector.broadcast %18 : vector<8x1xf32> to vector<8x128xf32>
    %24 = arith.subf %14, %23 : vector<8x128xf32>
    %25 = math.exp %24 : vector<8x128xf32>
    %cst_14 = arith.constant dense<0.000000e+00> : vector<8xf32>
    %26 = vector.multi_reduction <add>, %25, %cst_14 [1] : vector<8x128xf32> to vector<8xf32>
    %27 = vector.shape_cast %26 : vector<8xf32> to vector<8x1xf32>
    %28 = arith.addf %22, %27 : vector<8x1xf32>
    %c0_15 = arith.constant 0 : index
    %c0_16 = arith.constant 0 : index
    %29 = vector.load %arg13[%c0_15, %c0_16] : memref<8x1xf32, #tpu.memory_space<vmem>>, vector<8x1xf32>
    tpu.vector_store %arg13[%c0_15, %c0_16], %28 {strides = array<i32>} : memref<8x1xf32, #tpu.memory_space<vmem>>, vector<8x1xf32>,
    %c0_17 = arith.constant 0 : index
    %c0_18 = arith.constant 0 : index
    %30 = vector.load %arg12[%c0_17, %c0_18] : memref<8x1xf32, #tpu.memory_space<vmem>>, vector<8x1xf32>
    tpu.vector_store %arg12[%c0_17, %c0_18], %18 {strides = array<i32>} : memref<8x1xf32, #tpu.memory_space<vmem>>, vector<8x1xf32>,
    %c0_19 = arith.constant 0 : index
    %31 = arith.index_cast %arg1 : i32 to index
    %c0_20 = arith.constant 0 : index
    %c0_21 = arith.constant 0 : index
    %32 = vector.load %arg9[%c0_19, %31, %c0_20, %c0_21] : memref<1x2x8x128xf32, #tpu.memory_space<vmem>>, vector<1x1x8x128xf32>
    %33 = vector.shape_cast %32 : vector<1x1x8x128xf32> to vector<8x128xf32>
    %34 = vector.shape_cast %14 : vector<8x128xf32> to vector<1x1x8x128xf32>
    tpu.vector_store %arg9[%c0_19, %31, %c0_20, %c0_21], %34 {strides = array<i32>} : memref<1x2x8x128xf32, #tpu.memory_space<vmem>>, vector<1x1x8x128xf32>,
    %c1_i32 = arith.constant 1 : i32
    %35 = arith.cmpi eq, %arg1, %c1_i32 : i32
    %36 = arith.extui %35 : i1 to i32
    %c0_i32_22 = arith.constant 0 : i32
    %37 = arith.cmpi ne, %36, %c0_i32_22 : i32
    scf.if %37 {
      %c0_23 = arith.constant 0 : index
      %c0_24 = arith.constant 0 : index
      %38 = vector.load %arg12[%c0_23, %c0_24] : memref<8x1xf32, #tpu.memory_space<vmem>>, vector<8x1xf32>
      %c0_25 = arith.constant 0 : index
      %c0_26 = arith.constant 0 : index
      %39 = vector.load %arg13[%c0_25, %c0_26] : memref<8x1xf32, #tpu.memory_space<vmem>>, vector<8x1xf32>
      %40 = math.log %39 : vector<8x1xf32>
      %41 = arith.addf %38, %40 : vector<8x1xf32>
      %c0_27 = arith.constant 0 : index
      %c0_28 = arith.constant 0 : index
      %c0_29 = arith.constant 0 : index
      %c0_30 = arith.constant 0 : index
      %42 = vector.load %arg9[%c0_27, %c0_28, %c0_29, %c0_30] : memref<1x2x8x128xf32, #tpu.memory_space<vmem>>, vector<1x2x8x128xf32>
      %43 = vector.shape_cast %42 : vector<1x2x8x128xf32> to vector<2x8x128xf32>
      %44 = vector.shape_cast %41 : vector<8x1xf32> to vector<1x8x1xf32>
      %45 = vector.broadcast %44 : vector<1x8x1xf32> to vector<2x8x128xf32>
      %46 = arith.subf %43, %45 : vector<2x8x128xf32>
      %c0_31 = arith.constant 0 : index
      %c0_32 = arith.constant 0 : index
      %c0_33 = arith.constant 0 : index
      %c0_34 = arith.constant 0 : index
      %47 = vector.load %arg9[%c0_31, %c0_32, %c0_33, %c0_34] : memref<1x2x8x128xf32, #tpu.memory_space<vmem>>, vector<1x2x8x128xf32>
      %48 = vector.shape_cast %47 : vector<1x2x8x128xf32> to vector<2x8x128xf32>
      %49 = vector.shape_cast %46 : vector<2x8x128xf32> to vector<1x2x8x128xf32>
      tpu.vector_store %arg9[%c0_31, %c0_32, %c0_33, %c0_34], %49 {strides = array<i32>} : memref<1x2x8x128xf32, #tpu.memory_space<vmem>>, vector<1x2x8x128xf32>,
    } else {
    }
    return
  }
  func.func @transform_0(%arg0: i32, %arg1: i32) -> (i32, i32, i32) {
    %c0_i32 = arith.constant 0 : i32
    %c0_i32_0 = arith.constant 0 : i32
    %c0_i32_1 = arith.constant 0 : i32
    return %arg0, %c0_i32, %c0_i32_0 : i32, i32, i32
  }
  func.func @transform_1(%arg0: i32, %arg1: i32) -> (i32, i32) {
    %c0_i32 = arith.constant 0 : i32
    %c0_i32_0 = arith.constant 0 : i32
    %c0_i32_1 = arith.constant 0 : i32
    return %c0_i32, %c0_i32_0 : i32, i32
  }
  func.func @transform_2(%arg0: i32, %arg1: i32) -> (i32, i32) {
    %c0_i32 = arith.constant 0 : i32
    %c0_i32_0 = arith.constant 0 : i32
    %c0_i32_1 = arith.constant 0 : i32
    return %c0_i32, %c0_i32_0 : i32, i32
  }
  func.func @transform_3(%arg0: i32, %arg1: i32) -> (i32, i32) {
    %c0_i32 = arith.constant 0 : i32
    %c0_i32_0 = arith.constant 0 : i32
    %c0_i32_1 = arith.constant 0 : i32
    return %c0_i32, %c0_i32_0 : i32, i32
  }
  func.func @transform_4(%arg0: i32, %arg1: i32) -> (i32, i32) {
    %c0_i32 = arith.constant 0 : i32
    %c0_i32_0 = arith.constant 0 : i32
    %c0_i32_1 = arith.constant 0 : i32
    return %c0_i32, %c0_i32_0 : i32, i32
  }
  func.func @transform_5(%arg0: i32, %arg1: i32) -> (i32, i32) {
    %c0_i32 = arith.constant 0 : i32
    %c0_i32_0 = arith.constant 0 : i32
    return %c0_i32, %arg1 : i32, i32
  }
  func.func @transform_6(%arg0: i32, %arg1: i32) -> (i32, i32) {
    %c0_i32 = arith.constant 0 : i32
    %c0_i32_0 = arith.constant 0 : i32
    return %c0_i32, %arg1 : i32, i32
  }
  func.func @transform_7(%arg0: i32, %arg1: i32) -> (i32, i32, i32, i32) {
    %c0_i32 = arith.constant 0 : i32
    %c0_i32_0 = arith.constant 0 : i32
    %c0_i32_1 = arith.constant 0 : i32
    %c0_i32_2 = arith.constant 0 : i32
    return %arg0, %c0_i32, %c0_i32_0, %c0_i32_1 : i32, i32, i32, i32
  }
  func.func @transform_8(%arg0: i32, %arg1: i32) -> (i32, i32) {
    %c0_i32 = arith.constant 0 : i32
    %c0_i32_0 = arith.constant 0 : i32
    %c0_i32_1 = arith.constant 0 : i32
    return %c0_i32, %c0_i32_0 : i32, i32
  }
}

</mosaic_0001>

<llo_original>
// kernel: _lambda_.1
$region0: #{_lambda_.1}
  #allocation0 [shape = 'u32[]', space=smem, size = 0x4, offset = 0x4, fixed_abs, tag = 'smem constant byte address 0x4 - core index']
  #allocation1 [shape = 'u32[144,128]{1,0:T(1,128)}', space=vmem, size = 0x12000, scoped, tag = 'internal scratch']
  #allocation2 [shape = 'f32[8,128]{1,0:T(8,128)}', space=vmem, size = 0x1000, scoped, tag = 'scratch operand']
  #allocation3 [shape = 'f32[8,1]{1,0:T(8,128)}', space=vmem, size = 0x1000, scoped, tag = 'scratch operand']
  #allocation4 [shape = 'f32[8,1]{1,0:T(8,128)}', space=vmem, size = 0x1000, scoped, tag = 'scratch operand']
  %s0 = inlined_call_operand.vmem [shape: bf16[6,8,32], index: 0, kind: input, shape index: {}]
  %s1 = inlined_call_operand.vmem [shape: f32[8,128], index: 1, kind: input, shape index: {}]
  %s2 = inlined_call_operand.vmem [shape: bf16[32,512], index: 2, kind: input, shape index: {}]
  %s3 = inlined_call_operand.vmem [shape: bf16[128,512], index: 3, kind: input, shape index: {}]
  %s4 = inlined_call_operand.vmem [shape: f32[1,512], index: 4, kind: input, shape index: {}]
  %s5 = inlined_call_operand.vmem [shape: bf16[128,256], index: 5, kind: input, shape index: {}]
  %s6 = inlined_call_operand.vmem [shape: f32[1,256], index: 6, kind: input, shape index: {}]
  %s7 = inlined_call_operand.hbm [shape: f32[6,2,8,128], index: 7, kind: output, shape index: {0}]
  %s8 = inlined_call_operand.hbm [shape: f32[8,128], index: 8, kind: output, shape index: {1}]
  %9 = xla_tuple %s7, %s8
  %s10 = sld [smem:[#allocation0]]
  $region122: #{_lambda_.1} parent=0
    _
  %s12 = ssub.s32 1, %s10
  %s13 = scalar_select 0, %s12, %s10
  $region1: #{_lambda_.1} parent=0
    #allocation5 [shape = 'u8[65536]{0}', space=vmem, size = 0x10000, scoped, tag = 'input window, operand 5']
    #allocation6 [shape = 'u8[16384]{0}', space=vmem, size = 0x4000, scoped, tag = 'output window, operand 0']
    #allocation7 [shape = 's32[2]{0}', space=sflag, size = 0x8, scoped, tag = 'scoped memory for _lambda_.1']
    #allocation8 [shape = 'u8[4096]{0}', space=vmem, size = 0x1000, scoped, tag = 'output window, operand 1, single buffered']
    #allocation9 [shape = 's32[1]{0}', space=sflag, size = 0x4, scoped, tag = 'scoped memory for _lambda_.1']
    %14 = vsyncpa [#allocation7], 0
    %s15 = scalar_lea.sflag [#allocation7], 1
    %16 = vsyncpa %s15, 0
    %17 = vsyncpa [#allocation9], 0
    loop: start=0, step=1, limit=14
    $region2: #{_lambda_.1} parent=1 // loop_pre_header
      _
    $region3: #{_lambda_.1} parent=1 // loop_header
      %s19 = sphi 0, %s23
      %p20 = scmp.ge.s32.totalorder %s19, 14
      %s26 = sphi 0, %s38
      %s27 = sphi 0, %s34
      %s28 = sphi 0, %s26
      %s29 = sphi 0, %s27
      %s30 = sphi 0, %s28
      %s31 = sphi 0, %s29
      %s41 = sphi 0, %s43
      %s44 = sphi 0, %s41
      %s45 = sphi 0, %s44
      %s61 = sphi 0, %s45
      %s65 = sphi 0, %s65
      %s67 = sphi 0, %s65
      %s68 = sphi 0, %s67
      %s82 = sphi 0, %s68
      %s86 = sphi 0, %s86
      %s88 = sphi 0, %s86
      %s89 = sphi 0, %s88
      %s103 = sphi 0, %s89
      %s107 = sphi 0, %s107
      %s109 = sphi 0, %s107
      %s110 = sphi 0, %s109
      %s124 = sphi 0, %s110
      %s128 = sphi 0, %s128
      %s130 = sphi 0, %s128
      %s131 = sphi 0, %s130
      %s145 = sphi 0, %s131
      %s151 = sphi 0, %s153
      %s154 = sphi 0, %s151
      %s155 = sphi 0, %s154
      %s171 = sphi 0, %s155
      %s177 = sphi 0, %s179
      %s180 = sphi 0, %s177
      %s181 = sphi 0, %s180
      %s197 = sphi 0, %s181
      %s203 = sphi 0, %s205
      %s206 = sphi 0, %s203
      %s207 = sphi 0, %s206
      %s223 = sphi 0, %s207
      %s227 = sphi 0, %s227
      %s229 = sphi 0, %s227
      %s230 = sphi 0, %s229
      %s244 = sphi 0, %s230
    $region4: #{_lambda_.1} parent=1 // loop_header_branch
      %22 = sbr.rel (%p20) target = $region8
    $region5: #{_lambda_.1} parent=1 // loop_body
      %s24 = ssub.s32 %s19, 1
      %s25 = ssub.s32 %s19, 2
      %s32 = sadd.s32 1, %s27
      %p33 = scmp.ge.s32.totalorder %s32, 2
      %s34 = scalar_select %p33, 0, %s32
      %s35 = sadd.s32 1, %s26
      %s36 = scalar_select %p33, %s35, %s26
      %p37 = scmp.ge.s32.totalorder %s36, 6
      %s38 = scalar_select %p37, 0, %s36
      %s39 = ssub.s32 %s26, %s38
      %p40 = scmp.eq.s32.totalorder %s39, 0
      %s42 = sadd.s32 %s41, 1
      %s43 = scalar_select %p40, %s41, %s42
      %p46 = pneg %p40
      %p47 = scmp.eq.s32.totalorder %s19, 11
      %p48 = por %p46, %p47
      %p49 = scmp.ne.s32.totalorder %s41, %s44
      %p50 = scmp.eq.s32.totalorder %s19, 0
      %p51 = por %p49, %p50
      %p52 = scmp.ne.s32.totalorder %s41, %s44
      %p53 = scmp.eq.s32.totalorder %s24, 11
      %p54 = por %p52, %p53
      %p55 = scmp.ne.s32.totalorder %s44, %s45
      %p56 = scmp.eq.s32.totalorder %s24, 0
      %p57 = por %p55, %p56
      %p58 = scmp.ne.s32.totalorder %s44, %s45
      %p59 = scmp.eq.s32.totalorder %s25, 11
      %p60 = por %p58, %p59
      %p62 = scmp.ne.s32.totalorder %s45, %s61
      %p63 = scmp.eq.s32.totalorder %s25, 0
      %p64 = por %p62, %p63
      %s66 = sadd.s32 %s65, 1
      %p69 = scmp.eq.s32.totalorder %s19, 11
      %p70 = scmp.ne.s32.totalorder %s65, %s67
      %p71 = scmp.eq.s32.totalorder %s19, 0
      %p72 = por %p70, %p71
      %p73 = scmp.ne.s32.totalorder %s65, %s67
      %p74 = scmp.eq.s32.totalorder %s24, 11
      %p75 = por %p73, %p74
      %p76 = scmp.ne.s32.totalorder %s67, %s68
      %p77 = scmp.eq.s32.totalorder %s24, 0
      %p78 = por %p76, %p77
      %p79 = scmp.ne.s32.totalorder %s67, %s68
      %p80 = scmp.eq.s32.totalorder %s25, 11
      %p81 = por %p79, %p80
      %p83 = scmp.ne.s32.totalorder %s68, %s82
      %p84 = scmp.eq.s32.totalorder %s25, 0
      %p85 = por %p83, %p84
      %s87 = sadd.s32 %s86, 1
      %p90 = scmp.eq.s32.totalorder %s19, 11
      %p91 = scmp.ne.s32.totalorder %s86, %s88
      %p92 = scmp.eq.s32.totalorder %s19, 0
      %p93 = por %p91, %p92
      %p94 = scmp.ne.s32.totalorder %s86, %s88
      %p95 = scmp.eq.s32.totalorder %s24, 11
      %p96 = por %p94, %p95
      %p97 = scmp.ne.s32.totalorder %s88, %s89
      %p98 = scmp.eq.s32.totalorder %s24, 0
      %p99 = por %p97, %p98
      %p100 = scmp.ne.s32.totalorder %s88, %s89
      %p101 = scmp.eq.s32.totalorder %s25, 11
      %p102 = por %p100, %p101
      %p104 = scmp.ne.s32.totalorder %s89, %s103
      %p105 = scmp.eq.s32.totalorder %s25, 0
      %p106 = por %p104, %p105
      %s108 = sadd.s32 %s107, 1
      %p111 = scmp.eq.s32.totalorder %s19, 11
      %p112 = scmp.ne.s32.totalorder %s107, %s109
      %p113 = scmp.eq.s32.totalorder %s19, 0
      %p114 = por %p112, %p113
      %p115 = scmp.ne.s32.totalorder %s107, %s109
      %p116 = scmp.eq.s32.totalorder %s24, 11
      %p117 = por %p115, %p116
      %p118 = scmp.ne.s32.totalorder %s109, %s110
      %p119 = scmp.eq.s32.totalorder %s24, 0
      %p120 = por %p118, %p119
      %p121 = scmp.ne.s32.totalorder %s109, %s110
      %p122 = scmp.eq.s32.totalorder %s25, 11
      %p123 = por %p121, %p122
      %p125 = scmp.ne.s32.totalorder %s110, %s124
      %p126 = scmp.eq.s32.totalorder %s25, 0
      %p127 = por %p125, %p126
      %s129 = sadd.s32 %s128, 1
      %p132 = scmp.eq.s32.totalorder %s19, 11
      %p133 = scmp.ne.s32.totalorder %s128, %s130
      %p134 = scmp.eq.s32.totalorder %s19, 0
      %p135 = por %p133, %p134
      %p136 = scmp.ne.s32.totalorder %s128, %s130
      %p137 = scmp.eq.s32.totalorder %s24, 11
      %p138 = por %p136, %p137
      %p139 = scmp.ne.s32.totalorder %s130, %s131
      %p140 = scmp.eq.s32.totalorder %s24, 0
      %p141 = por %p139, %p140
      %p142 = scmp.ne.s32.totalorder %s130, %s131
      %p143 = scmp.eq.s32.totalorder %s25, 11
      %p144 = por %p142, %p143
      %p146 = scmp.ne.s32.totalorder %s131, %s145
      %p147 = scmp.eq.s32.totalorder %s25, 0
      %p148 = por %p146, %p147
      %s149 = ssub.s32 %s27, %s34
      %p150 = scmp.eq.s32.totalorder %s149, 0
      %s152 = sadd.s32 %s151, 1
      %s153 = scalar_select %p150, %s151, %s152
      %p156 = pneg %p150
      %p157 = scmp.eq.s32.totalorder %s19, 11
      %p158 = por %p156, %p157
      %p159 = scmp.ne.s32.totalorder %s151, %s154
      %p160 = scmp.eq.s32.totalorder %s19, 0
      %p161 = por %p159, %p160
      %p162 = scmp.ne.s32.totalorder %s151, %s154
      %p163 = scmp.eq.s32.totalorder %s24, 11
      %p164 = por %p162, %p163
      %p165 = scmp.ne.s32.totalorder %s154, %s155
      %p166 = scmp.eq.s32.totalorder %s24, 0
      %p167 = por %p165, %p166
      %p168 = scmp.ne.s32.totalorder %s154, %s155
      %p169 = scmp.eq.s32.totalorder %s25, 11
      %p170 = por %p168, %p169
      %p172 = scmp.ne.s32.totalorder %s155, %s171
      %p173 = scmp.eq.s32.totalorder %s25, 0
      %p174 = por %p172, %p173
      %s175 = ssub.s32 %s27, %s34
      %p176 = scmp.eq.s32.totalorder %s175, 0
      %s178 = sadd.s32 %s177, 1
      %s179 = scalar_select %p176, %s177, %s178
      %p182 = pneg %p176
      %p183 = scmp.eq.s32.totalorder %s19, 11
      %p184 = por %p182, %p183
      %p185 = scmp.ne.s32.totalorder %s177, %s180
      %p186 = scmp.eq.s32.totalorder %s19, 0
      %p187 = por %p185, %p186
      %p188 = scmp.ne.s32.totalorder %s177, %s180
      %p189 = scmp.eq.s32.totalorder %s24, 11
      %p190 = por %p188, %p189
      %p191 = scmp.ne.s32.totalorder %s180, %s181
      %p192 = scmp.eq.s32.totalorder %s24, 0
      %p193 = por %p191, %p192
      %p194 = scmp.ne.s32.totalorder %s180, %s181
      %p195 = scmp.eq.s32.totalorder %s25, 11
      %p196 = por %p194, %p195
      %p198 = scmp.ne.s32.totalorder %s181, %s197
      %p199 = scmp.eq.s32.totalorder %s25, 0
      %p200 = por %p198, %p199
      %s201 = ssub.s32 %s26, %s38
      %p202 = scmp.eq.s32.totalorder %s201, 0
      %s204 = sadd.s32 %s203, 1
      %s205 = scalar_select %p202, %s203, %s204
      %p208 = pneg %p202
      %p209 = scmp.eq.s32.totalorder %s19, 11
      %p210 = por %p208, %p209
      %p211 = scmp.ne.s32.totalorder %s203, %s206
      %p212 = scmp.eq.s32.totalorder %s19, 0
      %p213 = por %p211, %p212
      %p214 = scmp.ne.s32.totalorder %s203, %s206
      %p215 = scmp.eq.s32.totalorder %s24, 11
      %p216 = por %p214, %p215
      %p217 = scmp.ne.s32.totalorder %s206, %s207
      %p218 = scmp.eq.s32.totalorder %s24, 0
      %p219 = por %p217, %p218
      %p220 = scmp.ne.s32.totalorder %s206, %s207
      %p221 = scmp.eq.s32.totalorder %s25, 11
      %p222 = por %p220, %p221
      %p224 = scmp.ne.s32.totalorder %s207, %s223
      %p225 = scmp.eq.s32.totalorder %s25, 0
      %p226 = por %p224, %p225
      %s228 = sadd.s32 %s227, 1
      %p231 = scmp.eq.s32.totalorder %s19, 11
      %p232 = scmp.ne.s32.totalorder %s227, %s229
      %p233 = scmp.eq.s32.totalorder %s19, 0
      %p234 = por %p232, %p233
      %p235 = scmp.ne.s32.totalorder %s227, %s229
      %p236 = scmp.eq.s32.totalorder %s24, 11
      %p237 = por %p235, %p236
      %p238 = scmp.ne.s32.totalorder %s229, %s230
      %p239 = scmp.eq.s32.totalorder %s24, 0
      %p240 = por %p238, %p239
      %p241 = scmp.ne.s32.totalorder %s229, %s230
      %p242 = scmp.eq.s32.totalorder %s25, 11
      %p243 = por %p241, %p242
      %p245 = scmp.ne.s32.totalorder %s230, %s244
      %p246 = scmp.eq.s32.totalorder %s25, 0
      %p247 = por %p245, %p246
      %p248 = scmp.le.s32.totalorder 1, %s19
      %p249 = scmp.lt.s32.totalorder %s19, 13
      %p250 = pnand %p248, %p249
      %p251 = pneg %p250
      // Predicated region
      $region9: #{_lambda_.1} parent=5 // pred_check
        _
      $region10: #{_lambda_.1} parent=5 // pred_check_branch
        %253 = sbr.rel (%p250) target = $region12
      $region11: #{_lambda_.1} parent=5 // pred_region
        %s254 = ssub.s32 %s19, 1
        // Predicated region
        $region13: #{_lambda_.1} parent=11 // pred_check
          %p255 = pneg %p78
        $region14: #{_lambda_.1} parent=11 // pred_check_branch
          %257 = sbr.rel (%p255) target = $region16
        $region15: #{_lambda_.1} parent=11 // pred_region
          _
        $region16: #{_lambda_.1} parent=11 // pred_fallthru
          _
        // Predicated region
        $region17: #{_lambda_.1} parent=11 // pred_check
          %p258 = pneg %p99
        $region18: #{_lambda_.1} parent=11 // pred_check_branch
          %260 = sbr.rel (%p258) target = $region20
        $region19: #{_lambda_.1} parent=11 // pred_region
          _
        $region20: #{_lambda_.1} parent=11 // pred_fallthru
          _
        // Predicated region
        $region21: #{_lambda_.1} parent=11 // pred_check
          %p261 = pneg %p120
        $region22: #{_lambda_.1} parent=11 // pred_check_branch
          %263 = sbr.rel (%p261) target = $region24
        $region23: #{_lambda_.1} parent=11 // pred_region
          _
        $region24: #{_lambda_.1} parent=11 // pred_fallthru
          _
        // Predicated region
        $region25: #{_lambda_.1} parent=11 // pred_check
          %p264 = pneg %p141
        $region26: #{_lambda_.1} parent=11 // pred_check_branch
          %266 = sbr.rel (%p264) target = $region28
        $region27: #{_lambda_.1} parent=11 // pred_region
          _
        $region28: #{_lambda_.1} parent=11 // pred_fallthru
          _
      $region12: #{_lambda_.1} parent=5 // pred_fallthru
        _
      %p267 = scmp.lt.s32.totalorder %s19, 12
      // Predicated region
      $region29: #{_lambda_.1} parent=5 // pred_check
        %p268 = pneg %p267
      $region30: #{_lambda_.1} parent=5 // pred_check_branch
        %270 = sbr.rel (%p268) target = $region32
      $region31: #{_lambda_.1} parent=5 // pred_region
        // Predicated region
        $region33: #{_lambda_.1} parent=31 // pred_check
          %p271 = pneg %p51
        $region34: #{_lambda_.1} parent=31 // pred_check_branch
          %273 = sbr.rel (%p271) target = $region36
        $region35: #{_lambda_.1} parent=31 // pred_region
          %p274 = scmp.lt.s32.totalorder %s26, 5
          %s275 = scalar_select %p274, %s26, 5
          %s276 = smul.addr %s275, 4
          %s277 = scalar_lea.vmem %s0, %s276
        $region36: #{_lambda_.1} parent=31 // pred_fallthru
          _
        // Predicated region
        $region37: #{_lambda_.1} parent=31 // pred_check
          %p278 = pneg %p161
        $region38: #{_lambda_.1} parent=31 // pred_check_branch
          %280 = sbr.rel (%p278) target = $region40
        $region39: #{_lambda_.1} parent=31 // pred_region
          %s281 = sand.u32 %s151, 1
          %s282 = sand.u32 %s151, 1
          %s283 = smul.addr %s282, 64
          %s284 = scalar_lea.vmem [#allocation5], %s283
          %s285 = smul.addr %s27, 4
          %s286 = scalar_lea.vmem %s5, %s285
          // Predicated region
          $region41: #{_lambda_.1} parent=39 // pred_check
            _
          $region42: #{_lambda_.1} parent=39 // pred_check_branch
            %288 = sbr.rel (0) target = $region44
          $region43: #{_lambda_.1} parent=39 // pred_region
            // Predicated region
            $region45: #{_lambda_.1} parent=43 // pred_check
              _
            $region46: #{_lambda_.1} parent=43 // pred_check_branch
              %290 = sbr.rel target = $region48
            $region47: #{_lambda_.1} parent=43 // pred_region
              // Predicated region
              $region60: #{_lambda_.1} parent=47 // pred_check
                _
              $region61: #{_lambda_.1} parent=47 // pred_check_branch
                %335 = sbr.rel (0) target = $region63
              $region62: #{_lambda_.1} parent=47 // pred_region
                loop: start=0, step=1, limit=1
                $region64: #{_lambda_.1} parent=62 // loop_pre_header
                  _
                $region65: #{_lambda_.1} parent=62 // loop_header
                  %s337 = sphi 0, %s341
                  %p338 = scmp.ge.s32.totalorder %s337, 1
                  %s342 = sphi %s286, %s286
                  %s343 = sphi %s284, %s284
                $region66: #{_lambda_.1} parent=62 // loop_header_branch
                  %340 = sbr.rel (%p338) target = $region70
                $region67: #{_lambda_.1} parent=62 // loop_body
                  _
                $region68: #{_lambda_.1} parent=62 // loop_footer
                  %s341 = sadd.s32 1, %s337
                $region69: #{_lambda_.1} parent=62 // loop_footer_branch
                  %336 = sbr.rel target = $region65
                $region70: #{_lambda_.1} parent=62 // loop_exit
                  _
                loop: start=0, step=1, limit=1
                $region71: #{_lambda_.1} parent=62 // loop_pre_header
                  _
                $region72: #{_lambda_.1} parent=62 // loop_header
                  %s346 = sphi 0, %s350
                  %p347 = scmp.ge.s32.totalorder %s346, 1
                  %s351 = sphi %s286, %s286
                  %s352 = sphi %s284, %s284
                $region73: #{_lambda_.1} parent=62 // loop_header_branch
                  %349 = sbr.rel (%p347) target = $region77
                $region74: #{_lambda_.1} parent=62 // loop_body
                  %v353 = vld [vmem:[%s351] sm:$0xf]
                  %354 = vst [vmem:[%s352] sm:$0xf] %v353
                  %v355 = vld [vmem:[%s351 + $0x8] sm:$0xf]
                  %356 = vst [vmem:[%s352 + $0x4] sm:$0xf] %v355
                  %v357 = vld [vmem:[%s351 + $0x10] sm:$0xf]
                  %358 = vst [vmem:[%s352 + $0x8] sm:$0xf] %v357
                  %v359 = vld [vmem:[%s351 + $0x18] sm:$0xf]
                  %360 = vst [vmem:[%s352 + $0xc] sm:$0xf] %v359
                  %v361 = vld [vmem:[%s351 + $0x20] sm:$0xf]
                  %362 = vst [vmem:[%s352 + $0x10] sm:$0xf] %v361
                  %v363 = vld [vmem:[%s351 + $0x28] sm:$0xf]
                  %364 = vst [vmem:[%s352 + $0x14] sm:$0xf] %v363
                  %v365 = vld [vmem:[%s351 + $0x30] sm:$0xf]
                  %366 = vst [vmem:[%s352 + $0x18] sm:$0xf] %v365
                  %v367 = vld [vmem:[%s351 + $0x38] sm:$0xf]
                  %368 = vst [vmem:[%s352 + $0x1c] sm:$0xf] %v367
                  %v369 = vld [vmem:[%s351 + $0x40] sm:$0xf]
                  %370 = vst [vmem:[%s352 + $0x20] sm:$0xf] %v369
                  %v371 = vld [vmem:[%s351 + $0x48] sm:$0xf]
                  %372 = vst [vmem:[%s352 + $0x24] sm:$0xf] %v371
                  %v373 = vld [vmem:[%s351 + $0x50] sm:$0xf]
                  %374 = vst [vmem:[%s352 + $0x28] sm:$0xf] %v373
                  %v375 = vld [vmem:[%s351 + $0x58] sm:$0xf]
                  %376 = vst [vmem:[%s352 + $0x2c] sm:$0xf] %v375
                  %v377 = vld [vmem:[%s351 + $0x60] sm:$0xf]
                  %378 = vst [vmem:[%s352 + $0x30] sm:$0xf] %v377
                  %v379 = vld [vmem:[%s351 + $0x68] sm:$0xf]
                  %380 = vst [vmem:[%s352 + $0x34] sm:$0xf] %v379
                  %v381 = vld [vmem:[%s351 + $0x70] sm:$0xf]
                  %382 = vst [vmem:[%s352 + $0x38] sm:$0xf] %v381
                  %v383 = vld [vmem:[%s351 + $0x78] sm:$0xf]
                  %384 = vst [vmem:[%s352 + $0x3c] sm:$0xf] %v383
                $region75: #{_lambda_.1} parent=62 // loop_footer
                  %s350 = sadd.s32 1, %s346
                $region76: #{_lambda_.1} parent=62 // loop_footer_branch
                  %345 = sbr.rel target = $region72
                $region77: #{_lambda_.1} parent=62 // loop_exit
                  _
              $region63: #{_lambda_.1} parent=47 // pred_fallthru
                _
            $region48: #{_lambda_.1} parent=43 // pred_fallthru
              _
            // Predicated region
            $region49: #{_lambda_.1} parent=43 // pred_check
              _
            $region50: #{_lambda_.1} parent=43 // pred_check_branch
              %292 = sbr.rel (0) target = $region52
            $region51: #{_lambda_.1} parent=43 // pred_region
              loop: start=0, step=1, limit=1
              $region53: #{_lambda_.1} parent=51 // loop_pre_header
                _
              $region54: #{_lambda_.1} parent=51 // loop_header
                %s295 = sphi 0, %s299
                %p296 = scmp.ge.s32.totalorder %s295, 1
                %s300 = sphi %s286, %s286
                %s301 = sphi %s284, %s284
              $region55: #{_lambda_.1} parent=51 // loop_header_branch
                %298 = sbr.rel (%p296) target = $region59
              $region56: #{_lambda_.1} parent=51 // loop_body
                %v302 = vld [vmem:[%s300] sm:$0xf]
                %303 = vst [vmem:[%s301] sm:$0xf] %v302
                %v304 = vld [vmem:[%s300 + $0x8] sm:$0xf]
                %305 = vst [vmem:[%s301 + $0x4] sm:$0xf] %v304
                %v306 = vld [vmem:[%s300 + $0x10] sm:$0xf]
                %307 = vst [vmem:[%s301 + $0x8] sm:$0xf] %v306
                %v308 = vld [vmem:[%s300 + $0x18] sm:$0xf]
                %309 = vst [vmem:[%s301 + $0xc] sm:$0xf] %v308
                %v310 = vld [vmem:[%s300 + $0x20] sm:$0xf]
                %311 = vst [vmem:[%s301 + $0x10] sm:$0xf] %v310
                %v312 = vld [vmem:[%s300 + $0x28] sm:$0xf]
                %313 = vst [vmem:[%s301 + $0x14] sm:$0xf] %v312
                %v314 = vld [vmem:[%s300 + $0x30] sm:$0xf]
                %315 = vst [vmem:[%s301 + $0x18] sm:$0xf] %v314
                %v316 = vld [vmem:[%s300 + $0x38] sm:$0xf]
                %317 = vst [vmem:[%s301 + $0x1c] sm:$0xf] %v316
                %v318 = vld [vmem:[%s300 + $0x40] sm:$0xf]
                %319 = vst [vmem:[%s301 + $0x20] sm:$0xf] %v318
                %v320 = vld [vmem:[%s300 + $0x48] sm:$0xf]
                %321 = vst [vmem:[%s301 + $0x24] sm:$0xf] %v320
                %v322 = vld [vmem:[%s300 + $0x50] sm:$0xf]
                %323 = vst [vmem:[%s301 + $0x28] sm:$0xf] %v322
                %v324 = vld [vmem:[%s300 + $0x58] sm:$0xf]
                %325 = vst [vmem:[%s301 + $0x2c] sm:$0xf] %v324
                %v326 = vld [vmem:[%s300 + $0x60] sm:$0xf]
                %327 = vst [vmem:[%s301 + $0x30] sm:$0xf] %v326
                %v328 = vld [vmem:[%s300 + $0x68] sm:$0xf]
                %329 = vst [vmem:[%s301 + $0x34] sm:$0xf] %v328
                %v330 = vld [vmem:[%s300 + $0x70] sm:$0xf]
                %331 = vst [vmem:[%s301 + $0x38] sm:$0xf] %v330
                %v332 = vld [vmem:[%s300 + $0x78] sm:$0xf]
                %333 = vst [vmem:[%s301 + $0x3c] sm:$0xf] %v332
              $region57: #{_lambda_.1} parent=51 // loop_footer
                %s299 = sadd.s32 1, %s295
              $region58: #{_lambda_.1} parent=51 // loop_footer_branch
                %294 = sbr.rel target = $region54
              $region59: #{_lambda_.1} parent=51 // loop_exit
                _
            $region52: #{_lambda_.1} parent=43 // pred_fallthru
              _
          $region44: #{_lambda_.1} parent=39 // pred_fallthru
            _
          %385 = vnop
        $region40: #{_lambda_.1} parent=31 // pred_fallthru
          _
        // Predicated region
        $region78: #{_lambda_.1} parent=31 // pred_check
          %p386 = pneg %p187
        $region79: #{_lambda_.1} parent=31 // pred_check_branch
          %388 = sbr.rel (%p386) target = $region81
        $region80: #{_lambda_.1} parent=31 // pred_region
          %p389 = scmp.lt.s32.totalorder %s27, 1
          %s390 = scalar_select %p389, %s27, 1
          %s391 = scalar_lea.vmem %s6, %s390
        $region81: #{_lambda_.1} parent=31 // pred_fallthru
          _
      $region32: #{_lambda_.1} parent=5 // pred_fallthru
        _
      %p392 = scmp.le.s32.totalorder 1, %s19
      %p393 = scmp.lt.s32.totalorder %s19, 13
      %p394 = pnand %p392, %p393
      %p395 = pneg %p394
      // Predicated region
      $region82: #{_lambda_.1} parent=5 // pred_check
        _
      $region83: #{_lambda_.1} parent=5 // pred_check_branch
        %397 = sbr.rel (%p394) target = $region85
      $region84: #{_lambda_.1} parent=5 // pred_region
        %s398 = ssub.s32 %s19, 1
        %s399 = sand.u32 %s154, 1
        %s400 = sand.u32 %s154, 1
        %s401 = smul.addr %s400, 64
        %s402 = scalar_lea.vmem [#allocation5], %s401
        // Predicated region
        $region86: #{_lambda_.1} parent=84 // pred_check
          %p403 = pneg %p167
        $region87: #{_lambda_.1} parent=84 // pred_check_branch
          %405 = sbr.rel (%p403) target = $region89
        $region88: #{_lambda_.1} parent=84 // pred_region
          _
        $region89: #{_lambda_.1} parent=84 // pred_fallthru
          _
        %p406 = scmp.lt.s32.totalorder %s28, 5
        %s407 = scalar_select %p406, %s28, 5
        %s408 = smul.addr %s407, 4
        %s409 = scalar_lea.vmem %s0, %s408
        %p410 = pneg %p57
        %p411 = pneg %p54
        %p412 = pneg %p78
        %p413 = pneg %p75
        %p414 = pneg %p99
        %p415 = pneg %p96
        %p416 = pneg %p120
        %p417 = pneg %p117
        %p418 = pneg %p141
        %p419 = pneg %p138
        %s420 = sand.u32 %s154, 1
        %s421 = sand.u32 %s154, 1
        %s422 = smul.addr %s421, 64
        %s423 = scalar_lea.vmem [#allocation5], %s422
        %p424 = pneg %p167
        %p425 = pneg %p164
        %p426 = scmp.lt.s32.totalorder %s29, 1
        %s427 = scalar_select %p426, %s29, 1
        %s428 = scalar_lea.vmem %s6, %s427
        %p429 = pneg %p193
        %p430 = pneg %p190
        %p431 = pneg %p219
        %p432 = pneg %p216
        %s433 = sand.u32 %s206, 1
        %s434 = scalar_lea.sflag [#allocation7], %s433
        %s435 = sand.u32 %s206, 1
        %s436 = smul.addr %s435, 16
        %s437 = scalar_lea.vmem [#allocation6], %s436
        %p438 = pneg %p240
        %p439 = pneg %p237
        %p440 = scmp.lt.s32.totalorder %s28, 5
        %s441 = scalar_select %p440, %s28, 5
        %s442 = smul.addr %s441, 4
        %s443 = scalar_lea.vmem %s0, %s442
        %p444 = scmp.lt.s32.totalorder %s29, 1
        %s445 = scalar_select %p444, %s29, 1
        %s446 = scalar_lea.vmem %s6, %s445
        %p448 = scmp.eq.s32.totalorder %s28, 0
        %p449 = scmp.eq.s32.totalorder %s29, 0
        %p450 = pnand %p448, %p449
        %p451 = pneg %p450
        // Predicated region
        $region90: #{_lambda_.1} parent=84 // pred_check
          _
        $region91: #{_lambda_.1} parent=84 // pred_check_branch
          %453 = sbr.rel (%p450) target = $region93
        $region92: #{_lambda_.1} parent=84 // pred_region
          %v454 = vld [vmem:[%s1] sm:$0xff]
          %455 = vst [vmem:[#allocation2] sm:$0xff] %v454
        $region93: #{_lambda_.1} parent=84 // pred_fallthru
          _
        // Predicated region
        $region94: #{_lambda_.1} parent=84 // pred_check
          %p456 = pneg %p449
        $region95: #{_lambda_.1} parent=84 // pred_check_branch
          %458 = sbr.rel (%p456) target = $region97
        $region96: #{_lambda_.1} parent=84 // pred_region
          %v459 = vld [vmem:[%s443] sm:$0xf]
          %v460 = vmax.bf16 %v459, 0
          %v461 = vld [vmem:[#allocation2] sm:$0xff]
          %v462 = vld [vmem:[%s2] sm:$0xff]
          %v463 = vld [vmem:[%s2 + $0x8] sm:$0xff]
          %v464 = vld [vmem:[%s2 + $0x10] sm:$0xff]
          %v465 = vld [vmem:[%s2 + $0x18] sm:$0xff]
          %v466 = vld [vmem:[%s2 + $0x20] sm:$0xff]
          %v467 = vld [vmem:[%s2 + $0x28] sm:$0xff]
          %v468 = vld [vmem:[%s2 + $0x30] sm:$0xff]
          %v469 = vld [vmem:[%s2 + $0x38] sm:$0xff]
          %v470 = vpack.c.bf16 %v461, %v461
          %v471 = vld [vmem:[%s3] sm:$0xff]
          %v472 = vld [vmem:[%s3 + $0x8] sm:$0xff]
          %v473 = vld [vmem:[%s3 + $0x10] sm:$0xff]
          %v474 = vld [vmem:[%s3 + $0x18] sm:$0xff]
          %v475 = vld [vmem:[%s3 + $0x20] sm:$0xff]
          %v476 = vld [vmem:[%s3 + $0x28] sm:$0xff]
          %v477 = vld [vmem:[%s3 + $0x30] sm:$0xff]
          %v478 = vld [vmem:[%s3 + $0x38] sm:$0xff]
          %v479 = vld [vmem:[%s3 + $0x40] sm:$0xff]
          %v480 = vld [vmem:[%s3 + $0x48] sm:$0xff]
          %v481 = vld [vmem:[%s3 + $0x50] sm:$0xff]
          %v482 = vld [vmem:[%s3 + $0x58] sm:$0xff]
          %v483 = vld [vmem:[%s3 + $0x60] sm:$0xff]
          %v484 = vld [vmem:[%s3 + $0x68] sm:$0xff]
          %v485 = vld [vmem:[%s3 + $0x70] sm:$0xff]
          %v486 = vld [vmem:[%s3 + $0x78] sm:$0xff]
          %v487 = vld [vmem:[%s3 + $0x80] sm:$0xff]
          %v488 = vld [vmem:[%s3 + $0x88] sm:$0xff]
          %v489 = vld [vmem:[%s3 + $0x90] sm:$0xff]
          %v490 = vld [vmem:[%s3 + $0x98] sm:$0xff]
          %v491 = vld [vmem:[%s3 + $0xa0] sm:$0xff]
          %v492 = vld [vmem:[%s3 + $0xa8] sm:$0xff]
          %v493 = vld [vmem:[%s3 + $0xb0] sm:$0xff]
          %v494 = vld [vmem:[%s3 + $0xb8] sm:$0xff]
          %v495 = vld [vmem:[%s3 + $0xc0] sm:$0xff]
          %v496 = vld [vmem:[%s3 + $0xc8] sm:$0xff]
          %v497 = vld [vmem:[%s3 + $0xd0] sm:$0xff]
          %v498 = vld [vmem:[%s3 + $0xd8] sm:$0xff]
          %v499 = vld [vmem:[%s3 + $0xe0] sm:$0xff]
          %v500 = vld [vmem:[%s3 + $0xe8] sm:$0xff]
          %v501 = vld [vmem:[%s3 + $0xf0] sm:$0xff]
          %v502 = vld [vmem:[%s3 + $0xf8] sm:$0xff]
          %v535 = vunpack.c.l.b16 %v471
          %v536 = vunpack.c.h.b16 %v471
          %v537 = vunpack.c.l.b16 %v472
          %v538 = vunpack.c.h.b16 %v472
          %v539 = vunpack.c.l.b16 %v473
          %v540 = vunpack.c.h.b16 %v473
          %v541 = vunpack.c.l.b16 %v474
          %v542 = vunpack.c.h.b16 %v474
          %v543 = vunpack.c.l.b16 %v475
          %v544 = vunpack.c.h.b16 %v475
          %v545 = vunpack.c.l.b16 %v476
          %v546 = vunpack.c.h.b16 %v476
          %v547 = vunpack.c.l.b16 %v477
          %v548 = vunpack.c.h.b16 %v477
          %v549 = vunpack.c.l.b16 %v478
          %v550 = vunpack.c.h.b16 %v478
          %v551 = vunpack.c.l.b16 %v479
          %v552 = vunpack.c.h.b16 %v479
          %v553 = vunpack.c.l.b16 %v480
          %v554 = vunpack.c.h.b16 %v480
          %v555 = vunpack.c.l.b16 %v481
          %v556 = vunpack.c.h.b16 %v481
          %v557 = vunpack.c.l.b16 %v482
          %v558 = vunpack.c.h.b16 %v482
          %v559 = vunpack.c.l.b16 %v483
          %v560 = vunpack.c.h.b16 %v483
          %v561 = vunpack.c.l.b16 %v484
          %v562 = vunpack.c.h.b16 %v484
          %v563 = vunpack.c.l.b16 %v485
          %v564 = vunpack.c.h.b16 %v485
          %v565 = vunpack.c.l.b16 %v486
          %v566 = vunpack.c.h.b16 %v486
          %v567 = vunpack.c.l.b16 %v487
          %v568 = vunpack.c.h.b16 %v487
          %v569 = vunpack.c.l.b16 %v488
          %v570 = vunpack.c.h.b16 %v488
          %v571 = vunpack.c.l.b16 %v489
          %v572 = vunpack.c.h.b16 %v489
          %v573 = vunpack.c.l.b16 %v490
          %v574 = vunpack.c.h.b16 %v490
          %v575 = vunpack.c.l.b16 %v491
          %v576 = vunpack.c.h.b16 %v491
          %v577 = vunpack.c.l.b16 %v492
          %v578 = vunpack.c.h.b16 %v492
          %v579 = vunpack.c.l.b16 %v493
          %v580 = vunpack.c.h.b16 %v493
          %v581 = vunpack.c.l.b16 %v494
          %v582 = vunpack.c.h.b16 %v494
          %v583 = vunpack.c.l.b16 %v495
          %v584 = vunpack.c.h.b16 %v495
          %v585 = vunpack.c.l.b16 %v496
          %v586 = vunpack.c.h.b16 %v496
          %v587 = vunpack.c.l.b16 %v497
          %v588 = vunpack.c.h.b16 %v497
          %v589 = vunpack.c.l.b16 %v498
          %v590 = vunpack.c.h.b16 %v498
          %v591 = vunpack.c.l.b16 %v499
          %v592 = vunpack.c.h.b16 %v499
          %v593 = vunpack.c.l.b16 %v500
          %v594 = vunpack.c.h.b16 %v500
          %v595 = vunpack.c.l.b16 %v501
          %v596 = vunpack.c.h.b16 %v501
          %v597 = vunpack.c.l.b16 %v502
          %v598 = vunpack.c.h.b16 %v502
          %v599 = vpack.c.b16 %v539, %v535
          %v600 = vpack.c.b16 %v540, %v536
          %v601 = vpack.c.b16 %v541, %v537
          %v602 = vpack.c.b16 %v542, %v538
          %v603 = vpack.c.b16 %v547, %v543
          %v604 = vpack.c.b16 %v548, %v544
          %v605 = vpack.c.b16 %v549, %v545
          %v606 = vpack.c.b16 %v550, %v546
          %v607 = vpack.c.b16 %v555, %v551
          %v608 = vpack.c.b16 %v556, %v552
          %v609 = vpack.c.b16 %v557, %v553
          %v610 = vpack.c.b16 %v558, %v554
          %v611 = vpack.c.b16 %v563, %v559
          %v612 = vpack.c.b16 %v564, %v560
          %v613 = vpack.c.b16 %v565, %v561
          %v614 = vpack.c.b16 %v566, %v562
          %v615 = vpack.c.b16 %v571, %v567
          %v616 = vpack.c.b16 %v572, %v568
          %v617 = vpack.c.b16 %v573, %v569
          %v618 = vpack.c.b16 %v574, %v570
          %v619 = vpack.c.b16 %v579, %v575
          %v620 = vpack.c.b16 %v580, %v576
          %v621 = vpack.c.b16 %v581, %v577
          %v622 = vpack.c.b16 %v582, %v578
          %v623 = vpack.c.b16 %v587, %v583
          %v624 = vpack.c.b16 %v588, %v584
          %v625 = vpack.c.b16 %v589, %v585
          %v626 = vpack.c.b16 %v590, %v586
          %v627 = vpack.c.b16 %v595, %v591
          %v628 = vpack.c.b16 %v596, %v592
          %v629 = vpack.c.b16 %v597, %v593
          %v630 = vpack.c.b16 %v598, %v594
          %663 = vmatprep.subr.bf16.mxu0 %v600
          %664 = vmatpush1.bf16.msra.mxu0 %v599
          %665 = vmatprep.subr.bf16.mxu0 %v604
          %666 = vmatpush1.bf16.msra.mxu0 %v603
          %667 = vmatprep.subr.bf16.mxu0 %v608
          %668 = vmatpush1.bf16.msra.mxu0 %v607
          %669 = vmatprep.subr.bf16.mxu0 %v612
          %670 = vmatpush1.bf16.msra.mxu0 %v611
          %671 = vmatprep.subr.bf16.mxu0 %v616
          %672 = vmatpush1.bf16.msra.mxu0 %v615
          %673 = vmatprep.subr.bf16.mxu0 %v620
          %674 = vmatpush1.bf16.msra.mxu0 %v619
          %675 = vmatprep.subr.bf16.mxu0 %v624
          %676 = vmatpush1.bf16.msra.mxu0 %v623
          %677 = vmatprep.subr.bf16.mxu0 %v628
          %678 = vmatpush1.bf16.msra.mxu0 %v627
          %679 = vmatprep.subr.bf16.mxu0 0
          %680 = vmatpush1.bf16.msra.mxu0 0
          %681 = vmatprep.subr.bf16.mxu0 0
          %682 = vmatpush1.bf16.msra.mxu0 0
          %683 = vmatprep.subr.bf16.mxu0 0
          %684 = vmatpush1.bf16.msra.mxu0 0
          %685 = vmatprep.subr.bf16.mxu0 0
          %686 = vmatpush1.bf16.msra.mxu0 0
          %687 = vmatprep.subr.bf16.mxu0 0
          %688 = vmatpush1.bf16.msra.mxu0 0
          %689 = vmatprep.subr.bf16.mxu0 0
          %690 = vmatpush1.bf16.msra.mxu0 0
          %691 = vmatprep.subr.bf16.mxu0 0
          %692 = vmatpush1.bf16.msra.mxu0 0
          %693 = vmatprep.subr.bf16.mxu0 0
          %694 = vmatpush1.bf16.msra.mxu0 0
          %695 = vmatprep.mubr.bf16.mxu0 0
          %696 = vmatmul.mubr.bf16.gmra.mrb[0].mxu0 %v470
          %v697 = vpop.f32.mrb[0].mxu0
          %v698 = vadd.f32 0.0, %v697
          %v699 = vpop.f32.mrb[0].mxu0
          %v700 = vadd.f32 0.0, %v699
          %v701 = vpop.f32.mrb[0].mxu0
          %v702 = vpop.f32.mrb[0].mxu0
          %703 = vdwg.mxu0
          %704 = vmatprep.subr.bf16.mxu0 %v602
          %705 = vmatpush1.bf16.msra.mxu0 %v601
          %706 = vmatprep.subr.bf16.mxu0 %v606
          %707 = vmatpush1.bf16.msra.mxu0 %v605
          %708 = vmatprep.subr.bf16.mxu0 %v610
          %709 = vmatpush1.bf16.msra.mxu0 %v609
          %710 = vmatprep.subr.bf16.mxu0 %v614
          %711 = vmatpush1.bf16.msra.mxu0 %v613
          %712 = vmatprep.subr.bf16.mxu0 %v618
          %713 = vmatpush1.bf16.msra.mxu0 %v617
          %714 = vmatprep.subr.bf16.mxu0 %v622
          %715 = vmatpush1.bf16.msra.mxu0 %v621
          %716 = vmatprep.subr.bf16.mxu0 %v626
          %717 = vmatpush1.bf16.msra.mxu0 %v625
          %718 = vmatprep.subr.bf16.mxu0 %v630
          %719 = vmatpush1.bf16.msra.mxu0 %v629
          %720 = vmatprep.subr.bf16.mxu0 0
          %721 = vmatpush1.bf16.msra.mxu0 0
          %722 = vmatprep.subr.bf16.mxu0 0
          %723 = vmatpush1.bf16.msra.mxu0 0
          %724 = vmatprep.subr.bf16.mxu0 0
          %725 = vmatpush1.bf16.msra.mxu0 0
          %726 = vmatprep.subr.bf16.mxu0 0
          %727 = vmatpush1.bf16.msra.mxu0 0
          %728 = vmatprep.subr.bf16.mxu0 0
          %729 = vmatpush1.bf16.msra.mxu0 0
          %730 = vmatprep.subr.bf16.mxu0 0
          %731 = vmatpush1.bf16.msra.mxu0 0
          %732 = vmatprep.subr.bf16.mxu0 0
          %733 = vmatpush1.bf16.msra.mxu0 0
          %734 = vmatprep.subr.bf16.mxu0 0
          %735 = vmatpush1.bf16.msra.mxu0 0
          %736 = vmatprep.mubr.bf16.mxu0 0
          %737 = vmatmul.mubr.bf16.gmra.mrb[0].mxu0 %v470
          %v738 = vpop.f32.mrb[0].mxu0
          %v739 = vadd.f32 0.0, %v738
          %v740 = vpop.f32.mrb[0].mxu0
          %v741 = vadd.f32 0.0, %v740
          %v742 = vpop.f32.mrb[0].mxu0
          %v743 = vpop.f32.mrb[0].mxu0
          %744 = vdwg.mxu0
          %v753 = vunpack.c.l.b16 %v462
          %v754 = vunpack.c.h.b16 %v462
          %v755 = vunpack.c.l.b16 %v463
          %v756 = vunpack.c.h.b16 %v463
          %v757 = vunpack.c.l.b16 %v464
          %v758 = vunpack.c.h.b16 %v464
          %v759 = vunpack.c.l.b16 %v465
          %v760 = vunpack.c.h.b16 %v465
          %v761 = vunpack.c.l.b16 %v466
          %v762 = vunpack.c.h.b16 %v466
          %v763 = vunpack.c.l.b16 %v467
          %v764 = vunpack.c.h.b16 %v467
          %v765 = vunpack.c.l.b16 %v468
          %v766 = vunpack.c.h.b16 %v468
          %v767 = vunpack.c.l.b16 %v469
          %v768 = vunpack.c.h.b16 %v469
          %v769 = vpack.c.b16 %v757, %v753
          %v770 = vpack.c.b16 %v758, %v754
          %v771 = vpack.c.b16 %v759, %v755
          %v772 = vpack.c.b16 %v760, %v756
          %v773 = vpack.c.b16 %v765, %v761
          %v774 = vpack.c.b16 %v766, %v762
          %v775 = vpack.c.b16 %v767, %v763
          %v776 = vpack.c.b16 %v768, %v764
          %vm785 = vcmask 261120
          %v787 = vsel %vm785, %v460, 0
          %789 = vmatprep.subr.bf16.mxu0 %v770
          %790 = vmatpush1.bf16.msra.mxu0 %v769
          %791 = vmatprep.subr.bf16.mxu0 %v774
          %792 = vmatpush1.bf16.msra.mxu0 %v773
          %793 = vmatprep.subr.bf16.mxu0 0
          %794 = vmatpush1.bf16.msra.mxu0 0
          %795 = vmatprep.subr.bf16.mxu0 0
          %796 = vmatpush1.bf16.msra.mxu0 0
          %797 = vmatprep.subr.bf16.mxu0 0
          %798 = vmatpush1.bf16.msra.mxu0 0
          %799 = vmatprep.subr.bf16.mxu0 0
          %800 = vmatpush1.bf16.msra.mxu0 0
          %801 = vmatprep.subr.bf16.mxu0 0
          %802 = vmatpush1.bf16.msra.mxu0 0
          %803 = vmatprep.subr.bf16.mxu0 0
          %804 = vmatpush1.bf16.msra.mxu0 0
          %805 = vmatprep.subr.bf16.mxu0 0
          %806 = vmatpush1.bf16.msra.mxu0 0
          %807 = vmatprep.subr.bf16.mxu0 0
          %808 = vmatpush1.bf16.msra.mxu0 0
          %809 = vmatprep.subr.bf16.mxu0 0
          %810 = vmatpush1.bf16.msra.mxu0 0
          %811 = vmatprep.subr.bf16.mxu0 0
          %812 = vmatpush1.bf16.msra.mxu0 0
          %813 = vmatprep.subr.bf16.mxu0 0
          %814 = vmatpush1.bf16.msra.mxu0 0
          %815 = vmatprep.subr.bf16.mxu0 0
          %816 = vmatpush1.bf16.msra.mxu0 0
          %817 = vmatprep.subr.bf16.mxu0 0
          %818 = vmatpush1.bf16.msra.mxu0 0
          %819 = vmatprep.subr.bf16.mxu0 0
          %820 = vmatpush1.bf16.msra.mxu0 0
          %821 = vmatprep.mubr.bf16.mxu0 0
          %822 = vmatmul.mubr.bf16.gmra.mrb[0].mxu0 %v787
          %v823 = vpop.f32.mrb[0].mxu0
          %v824 = vadd.f32 %v698, %v823
          %v825 = vpop.f32.mrb[0].mxu0
          %v826 = vadd.f32 %v700, %v825
          %v827 = vpop.f32.mrb[0].mxu0
          %v828 = vpop.f32.mrb[0].mxu0
          %829 = vdwg.mxu0
          %830 = vmatprep.subr.bf16.mxu0 %v772
          %831 = vmatpush1.bf16.msra.mxu0 %v771
          %832 = vmatprep.subr.bf16.mxu0 %v776
          %833 = vmatpush1.bf16.msra.mxu0 %v775
          %834 = vmatprep.subr.bf16.mxu0 0
          %835 = vmatpush1.bf16.msra.mxu0 0
          %836 = vmatprep.subr.bf16.mxu0 0
          %837 = vmatpush1.bf16.msra.mxu0 0
          %838 = vmatprep.subr.bf16.mxu0 0
          %839 = vmatpush1.bf16.msra.mxu0 0
          %840 = vmatprep.subr.bf16.mxu0 0
          %841 = vmatpush1.bf16.msra.mxu0 0
          %842 = vmatprep.subr.bf16.mxu0 0
          %843 = vmatpush1.bf16.msra.mxu0 0
          %844 = vmatprep.subr.bf16.mxu0 0
          %845 = vmatpush1.bf16.msra.mxu0 0
          %846 = vmatprep.subr.bf16.mxu0 0
          %847 = vmatpush1.bf16.msra.mxu0 0
          %848 = vmatprep.subr.bf16.mxu0 0
          %849 = vmatpush1.bf16.msra.mxu0 0
          %850 = vmatprep.subr.bf16.mxu0 0
          %851 = vmatpush1.bf16.msra.mxu0 0
          %852 = vmatprep.subr.bf16.mxu0 0
          %853 = vmatpush1.bf16.msra.mxu0 0
          %854 = vmatprep.subr.bf16.mxu0 0
          %855 = vmatpush1.bf16.msra.mxu0 0
          %856 = vmatprep.subr.bf16.mxu0 0
          %857 = vmatpush1.bf16.msra.mxu0 0
          %858 = vmatprep.subr.bf16.mxu0 0
          %859 = vmatpush1.bf16.msra.mxu0 0
          %860 = vmatprep.subr.bf16.mxu0 0
          %861 = vmatpush1.bf16.msra.mxu0 0
          %862 = vmatprep.mubr.bf16.mxu0 0
          %863 = vmatmul.mubr.bf16.gmra.mrb[0].mxu0 %v787
          %v864 = vpop.f32.mrb[0].mxu0
          %v865 = vadd.f32 %v739, %v864
          %v866 = vpop.f32.mrb[0].mxu0
          %v867 = vadd.f32 %v741, %v866
          %v868 = vpop.f32.mrb[0].mxu0
          %v869 = vpop.f32.mrb[0].mxu0
          %870 = vdwg.mxu0
          %v871 = vld [vmem:[%s4] sm:$0xf]
          %v873 = vlaneseq
          %v874 = vshrl.u32 %v873, 7
          %v875 = vsub.s32 0, %v874
          %v876 = vrot.slane %v871, %v875
          %v877 = vlaneseq
          %v878 = vshrl.u32 %v877, 7
          %v879 = vsub.s32 1, %v878
          %v880 = vrot.slane %v871, %v879
          %v881 = vlaneseq
          %v882 = vshrl.u32 %v881, 7
          %v883 = vsub.s32 2, %v882
          %v884 = vrot.slane %v871, %v883
          %v885 = vlaneseq
          %v886 = vshrl.u32 %v885, 7
          %v887 = vsub.s32 3, %v886
          %v888 = vrot.slane %v871, %v887
          %v893 = vadd.f32 %v824, %v876
          %v894 = vadd.f32 %v826, %v880
          %v895 = vadd.f32 %v865, %v884
          %v896 = vadd.f32 %v867, %v888
          %v897 = vxor.u32 %v893, 2147483648
          %v898 = vmul.f32 %v897, 1.442695
          %v899 = vpow.pop %v898
          %v900 = vadd.f32 %v899, 1.0
          %v901 = vrcp.pop %v900
          %v902 = vmul.f32 1.0, %v901
          %v903 = vxor.u32 %v894, 2147483648
          %v904 = vmul.f32 %v903, 1.442695
          %v905 = vpow.pop %v904
          %v906 = vadd.f32 %v905, 1.0
          %v907 = vrcp.pop %v906
          %v908 = vmul.f32 1.0, %v907
          %v909 = vmul.f32 %v902, %v896
          %v910 = vadd.f32 %v895, %v909
          %v911 = vtanh.pop %v910
          %v912 = vsub.f32 1.0, %v908
          %v913 = vmul.f32 %v912, %v911
          %v914 = vmul.f32 %v908, %v461
          %v915 = vadd.f32 %v913, %v914
          %916 = vst [vmem:[#allocation2] sm:$0xff] %v915
          %917 = vst [vmem:[#allocation8] sm:$0xff] %v915
          %vm918 = vcmask 7168
          %919 = vst.msk [vmem:[#allocation3] sm:$0xff] %vm918, -inf
          %920 = vst.msk [vmem:[#allocation4] sm:$0xff] %vm918, 0.0
        $region97: #{_lambda_.1} parent=84 // pred_fallthru
          _
        %v921 = vld [vmem:[#allocation2] sm:$0xff]
        %v922 = vpack.c.bf16 %v921, %v921
        %v923 = vld [vmem:[%s402] sm:$0xf]
        %v924 = vld [vmem:[%s402 + $0x4] sm:$0xf]
        %v925 = vld [vmem:[%s402 + $0x8] sm:$0xf]
        %v926 = vld [vmem:[%s402 + $0xc] sm:$0xf]
        %v927 = vld [vmem:[%s402 + $0x10] sm:$0xf]
        %v928 = vld [vmem:[%s402 + $0x14] sm:$0xf]
        %v929 = vld [vmem:[%s402 + $0x18] sm:$0xf]
        %v930 = vld [vmem:[%s402 + $0x1c] sm:$0xf]
        %v931 = vld [vmem:[%s402 + $0x20] sm:$0xf]
        %v932 = vld [vmem:[%s402 + $0x24] sm:$0xf]
        %v933 = vld [vmem:[%s402 + $0x28] sm:$0xf]
        %v934 = vld [vmem:[%s402 + $0x2c] sm:$0xf]
        %v935 = vld [vmem:[%s402 + $0x30] sm:$0xf]
        %v936 = vld [vmem:[%s402 + $0x34] sm:$0xf]
        %v937 = vld [vmem:[%s402 + $0x38] sm:$0xf]
        %v938 = vld [vmem:[%s402 + $0x3c] sm:$0xf]
        %v939 = vld [vmem:[%s446] sm:$0x1]
        %v941 = vlaneseq
        %v942 = vshrl.u32 %v941, 7
        %v943 = vsub.s32 0, %v942
        %v944 = vrot.slane %v939, %v943
        %v962 = vunpack.c.l.b16 %v923
        %v963 = vunpack.c.l.b16 %v924
        %v964 = vunpack.c.l.b16 %v925
        %v965 = vunpack.c.l.b16 %v926
        %v966 = vunpack.c.l.b16 %v927
        %v967 = vunpack.c.l.b16 %v928
        %v968 = vunpack.c.l.b16 %v929
        %v969 = vunpack.c.l.b16 %v930
        %v970 = vunpack.c.l.b16 %v931
        %v971 = vunpack.c.l.b16 %v932
        %v972 = vunpack.c.l.b16 %v933
        %v973 = vunpack.c.l.b16 %v934
        %v974 = vunpack.c.l.b16 %v935
        %v975 = vunpack.c.l.b16 %v936
        %v976 = vunpack.c.l.b16 %v937
        %v977 = vunpack.c.l.b16 %v938
        %v978 = vpack.c.b16 %v963, %v962
        %v979 = vpack.c.b16 %v965, %v964
        %v980 = vpack.c.b16 %v967, %v966
        %v981 = vpack.c.b16 %v969, %v968
        %v982 = vpack.c.b16 %v971, %v970
        %v983 = vpack.c.b16 %v973, %v972
        %v984 = vpack.c.b16 %v975, %v974
        %v985 = vpack.c.b16 %v977, %v976
        %994 = vmatprep.subr.bf16.mxu0 0
        %995 = vmatpush1.bf16.msra.mxu0 %v978
        %996 = vmatprep.subr.bf16.mxu0 0
        %997 = vmatpush1.bf16.msra.mxu0 %v979
        %998 = vmatprep.subr.bf16.mxu0 0
        %999 = vmatpush1.bf16.msra.mxu0 %v980
        %1000 = vmatprep.subr.bf16.mxu0 0
        %1001 = vmatpush1.bf16.msra.mxu0 %v981
        %1002 = vmatprep.subr.bf16.mxu0 0
        %1003 = vmatpush1.bf16.msra.mxu0 %v982
        %1004 = vmatprep.subr.bf16.mxu0 0
        %1005 = vmatpush1.bf16.msra.mxu0 %v983
        %1006 = vmatprep.subr.bf16.mxu0 0
        %1007 = vmatpush1.bf16.msra.mxu0 %v984
        %1008 = vmatprep.subr.bf16.mxu0 0
        %1009 = vmatpush1.bf16.msra.mxu0 %v985
        %1010 = vmatprep.subr.bf16.mxu0 0
        %1011 = vmatpush1.bf16.msra.mxu0 0
        %1012 = vmatprep.subr.bf16.mxu0 0
        %1013 = vmatpush1.bf16.msra.mxu0 0
        %1014 = vmatprep.subr.bf16.mxu0 0
        %1015 = vmatpush1.bf16.msra.mxu0 0
        %1016 = vmatprep.subr.bf16.mxu0 0
        %1017 = vmatpush1.bf16.msra.mxu0 0
        %1018 = vmatprep.subr.bf16.mxu0 0
        %1019 = vmatpush1.bf16.msra.mxu0 0
        %1020 = vmatprep.subr.bf16.mxu0 0
        %1021 = vmatpush1.bf16.msra.mxu0 0
        %1022 = vmatprep.subr.bf16.mxu0 0
        %1023 = vmatpush1.bf16.msra.mxu0 0
        %1024 = vmatprep.subr.bf16.mxu0 0
        %1025 = vmatpush1.bf16.msra.mxu0 0
        %1026 = vmatprep.mubr.bf16.mxu0 0
        %1027 = vmatmul.mubr.bf16.gmra.mrb[0].mxu0 %v922
        %v1028 = vpop.f32.mrb[0].mxu0
        %v1029 = vadd.f32 %v944, %v1028
        %v1030 = vpop.f32.mrb[0].mxu0
        %v1031 = vpop.f32.mrb[0].mxu0
        %v1032 = vpop.f32.mrb[0].mxu0
        %1033 = vdwg.mxu0
        %v1034 = vld [vmem:[#allocation3] sm:$0xff]
        %1035 = vmax.xlane.f32.xlu0 %v1029
        %v1036 = vpop.xlane.xlu0 %1035
        %v1037 = vmax.f32 %v1034, %v1036
        %v1038 = vld [vmem:[#allocation4] sm:$0xff]
        %v1039 = vsub.f32 %v1034, %v1037
        %v1040 = vmul.f32 %v1039, 1.442695
        %v1041 = vpow.pop %v1040
        %v1042 = vmul.f32 %v1038, %v1041
        %1044 = vset.pattern.permute.xlu0 0
        %1045 = vperm.xlu0 %1044, %v1037
        %v1046 = vpop.permute.xlu0 %1045
        %v1048 = vsub.f32 %v1029, %v1046
        %v1049 = vmul.f32 %v1048, 1.442695
        %v1050 = vpow.pop %v1049
        %1051 = vadd.xlane.f32.xlu0 %v1050
        %v1052 = vpop.xlane.xlu0 %1051
        %v1053 = vadd.f32 %v1042, %v1052
        %vm1054 = vcmask 7168
        %1055 = vst.msk [vmem:[#allocation4] sm:$0xff] %vm1054, %v1053
        %1056 = vst.msk [vmem:[#allocation3] sm:$0xff] %vm1054, %v1037
        %s1057 = smul.u32 %s29, 8
        %s1058 = scalar_lea.vmem %s437, %s1057 [#allocation6]
        %1059 = vst [vmem:[%s1058] sm:$0xff] %v1029
        %p1060 = scmp.eq.s32.totalorder %s29, 1
        // Predicated region
        $region98: #{_lambda_.1} parent=84 // pred_check
          %p1061 = pneg %p1060
        $region99: #{_lambda_.1} parent=84 // pred_check_branch
          %1063 = sbr.rel (%p1061) target = $region101
        $region100: #{_lambda_.1} parent=84 // pred_region
          %v1064 = vld [vmem:[#allocation3] sm:$0xff]
          %v1065 = vld [vmem:[#allocation4] sm:$0xff]
          %v1066 = vlog2.pop %v1065
          %v1067 = vmul.f32 %v1066, 0.6931472
          %v1068 = vadd.f32 %v1064, %v1067
          %v1069 = vld [vmem:[%s437] sm:$0xff]
          %v1070 = vld [vmem:[%s437 + $0x8] sm:$0xff]
          %1072 = vset.pattern.permute.xlu0 0
          %1073 = vperm.xlu0 %1072, %v1068
          %v1074 = vpop.permute.xlu0 %1073
          %v1076 = vsub.f32 %v1069, %v1074
          %v1077 = vsub.f32 %v1070, %v1074
          %1078 = vst [vmem:[%s437] sm:$0xff] %v1076
          %1079 = vst [vmem:[%s437 + $0x8] sm:$0xff] %v1077
        $region101: #{_lambda_.1} parent=84 // pred_fallthru
          _
        %s1080 = sand.u32 %s206, 1
        %s1081 = scalar_lea.sflag [#allocation7], %s1080
        %s1082 = sand.u32 %s206, 1
        %s1083 = smul.addr %s1082, 16
        %s1084 = scalar_lea.vmem [#allocation6], %s1083
        // Predicated region
        $region102: #{_lambda_.1} parent=84 // pred_check
          %p1085 = pneg %p216
        $region103: #{_lambda_.1} parent=84 // pred_check_branch
          %1087 = sbr.rel (%p1085) target = $region105
        $region104: #{_lambda_.1} parent=84 // pred_region
          %s1089 = ssub.s32 256, 256
          %1090 = vsyncadd %s1081, %s1089
          %s1091 = smul.addr %s28, 2
          %s1092 = smul.addr %s1091, 128
          %s1093 = scalar_lea.hbm %s7, %s1092
          %s1094 = sshll.u32 %s1084, 4
          %s1095 = int_to_ptr.vmem [resolvable:$true] %s1094
          %1100 = dma.vmem_to_hbm [thread:$0]  %s1095, 256, %s1093, %s1081, 128, 128, 8
        $region105: #{_lambda_.1} parent=84 // pred_fallthru
          _
        // Predicated region
        $region106: #{_lambda_.1} parent=84 // pred_check
          %p1101 = pneg %p237
        $region107: #{_lambda_.1} parent=84 // pred_check_branch
          %1103 = sbr.rel (%p1101) target = $region109
        $region108: #{_lambda_.1} parent=84 // pred_region
          %s1105 = ssub.s32 128, 128
          %1106 = vsyncadd [#allocation9], %s1105
          %s1108 = sshll.u32 [#allocation8], 4
          %s1109 = int_to_ptr.vmem [resolvable:$true] %s1108
          %1111 = dma.vmem_to_hbm [thread:$0]  %s1109, 128, %s8, [#allocation9]
        $region109: #{_lambda_.1} parent=84 // pred_fallthru
          _
        // Predicated region
        $region110: #{_lambda_.1} parent=84 // pred_check
          %p1112 = pneg %p237
        $region111: #{_lambda_.1} parent=84 // pred_check_branch
          %1114 = sbr.rel (%p1112) target = $region113
        $region112: #{_lambda_.1} parent=84 // pred_region
          %1115 = dma.done [#allocation9], 128
        $region113: #{_lambda_.1} parent=84 // pred_fallthru
          _
      $region85: #{_lambda_.1} parent=5 // pred_fallthru
        _
      %p1116 = scmp.le.s32.totalorder 2, %s19
      // Predicated region
      $region114: #{_lambda_.1} parent=5 // pred_check
        %p1117 = pneg %p1116
      $region115: #{_lambda_.1} parent=5 // pred_check_branch
        %1119 = sbr.rel (%p1117) target = $region117
      $region116: #{_lambda_.1} parent=5 // pred_region
        %s1120 = ssub.s32 %s19, 2
        // Predicated region
        $region118: #{_lambda_.1} parent=116 // pred_check
          %p1121 = pneg %p222
        $region119: #{_lambda_.1} parent=116 // pred_check_branch
          %1123 = sbr.rel (%p1121) target = $region121
        $region120: #{_lambda_.1} parent=116 // pred_region
          %s1124 = sand.u32 %s207, 1
          %s1125 = scalar_lea.sflag [#allocation7], %s1124
          %s1126 = sand.u32 %s207, 1
          %s1127 = smul.addr %s1126, 16
          %s1128 = scalar_lea.vmem [#allocation6], %s1127
          %1129 = dma.done %s1125, 256
        $region121: #{_lambda_.1} parent=116 // pred_fallthru
          _
      $region117: #{_lambda_.1} parent=5 // pred_fallthru
        _
    $region6: #{_lambda_.1} parent=1 // loop_footer
      %s23 = sadd.s32 1, %s19
    $region7: #{_lambda_.1} parent=1 // loop_footer_branch
      %18 = sbr.rel target = $region3
    $region8: #{_lambda_.1} parent=1 // loop_exit
      _
    %1130 = vsyncpa [#allocation7], 1
    %s1131 = scalar_lea.sflag [#allocation7], 1
    %1132 = vsyncpa %s1131, 1
    %1133 = vsyncpa [#allocation9], 1

</llo_original>
